<compile_context>
chip_gen: v7x
topology: tpu7x:2x2x1
jax: 0.10.0
libtpu: 0.0.40
codegen_flags: <defaults>
</compile_context>

<pallas_src>
import functools

import jax
import jax.numpy as jnp
from jax.experimental import pallas as pl
from jax.experimental.pallas import tpu as pltpu


def _attn_lstm_kernel(q_ref, s_ref, wih_t_ref, whh_t_ref, b_ref, out_ref,
                      *, unrolling_steps: int):
    q = q_ref[...].astype(jnp.float32)          # (B, D) f32 (skip connection)
    q_bf = q.astype(jnp.bfloat16)               # (B, D) bf16 (MXU operand)
    s_bf = s_ref[...].astype(jnp.bfloat16)      # (S, D) bf16
    wih_t = wih_t_ref[...]                      # (D, 4D) bf16
    whh_t = whh_t_ref[...]                      # (D, 4D) bf16
    b = b_ref[...].astype(jnp.float32)          # (1, 4D) f32

    B, D = q.shape

    # Loop-invariant input projection: q and W_ih never change across steps.
    gates_q = jnp.dot(q_bf, wih_t, preferred_element_type=jnp.float32) + b  # (B, 4D)

    h_hat = jnp.zeros((B, D), jnp.float32)
    c = jnp.zeros((B, D), jnp.float32)

    # unrolling_steps is a small static int -> Python loop unrolls at trace
    # time (full LLO visibility).  Switch to lax.fori_loop with carried
    # (h_hat, c) if this ever grows large.
    for _ in range(unrolling_steps):
        h = h_hat + q                                                 # (B, D) f32
        h_bf = h.astype(jnp.bfloat16)

        # attentions = softmax(h @ support.T, dim=1)   (bf16 MXU, f32 acc)
        logits = jax.lax.dot_general(
            h_bf, s_bf, (((1,), (1,)), ((), ())),
            preferred_element_type=jnp.float32)                       # (B, S)
        m = jnp.max(logits, axis=1, keepdims=True)
        p = jnp.exp(logits - m)
        denom = jnp.sum(p, axis=1, keepdims=True)
        attn = p * pl.reciprocal(denom, approx=True)                  # (B, S)

        # readout = attentions @ support
        readout = jnp.dot(attn.astype(jnp.bfloat16), s_bf,
                          preferred_element_type=jnp.float32)         # (B, D)

        # LSTMCell(queries, (h + readout, c))
        hx = (h + readout).astype(jnp.bfloat16)
        gates = gates_q + jnp.dot(hx, whh_t,
                                  preferred_element_type=jnp.float32)  # (B, 4D)

        i_g = jax.nn.sigmoid(gates[:, 0 * D:1 * D])
        f_g = jax.nn.sigmoid(gates[:, 1 * D:2 * D])
        g_g = jnp.tanh(gates[:, 2 * D:3 * D])
        o_g = jax.nn.sigmoid(gates[:, 3 * D:4 * D])

        c = f_g * c + i_g * g_g
        h_hat = o_g * jnp.tanh(c)

    out_ref[...] = (h_hat + q).astype(out_ref.dtype)


def prepare_params(w_ih, w_hh, b_ih, b_hh):
    """One-time parameter prep: transpose weights, cast to bf16, fold biases.

    w_ih, w_hh: (4D, D) PyTorch LSTMCell layout; b_ih, b_hh: (4D,).
    Do this once per model, NOT per forward call.
    """
    wih_t = jnp.asarray(w_ih, jnp.float32).T.astype(jnp.bfloat16)   # (D, 4D)
    whh_t = jnp.asarray(w_hh, jnp.float32).T.astype(jnp.bfloat16)   # (D, 4D)
    bias = (jnp.asarray(b_ih, jnp.float32)
            + jnp.asarray(b_hh, jnp.float32)).reshape(1, -1)        # (1, 4D) f32
    return wih_t, whh_t, bias


def attention_lstm_forward(support, queries, wih_t, whh_t, bias,
                           *, unrolling_steps: int):
    """Pallas AttentionLSTM.forward over a batch of episodes.

    support: (E, S, D) f32, queries: (E, B, D) f32.
    wih_t/whh_t/bias: output of prepare_params (weights resident in VMEM
    across the episode grid).
    Returns h = h_hat + queries, shape (E, B, D), float32.
    """
    if support.shape[-1] != queries.shape[-1]:
        raise ValueError('Support and query set have different embedding dimension!')

    E, B, D = queries.shape
    _, S, _ = support.shape

    kernel = functools.partial(_attn_lstm_kernel,
                               unrolling_steps=unrolling_steps)

    # TODO(synk): if many episodes share the same support set, fold the
    # episode axis into B to fill the MXU rows (>=128) instead of looping.
    grid_spec = pltpu.PrefetchScalarGridSpec(
        num_scalar_prefetch=0,
        grid=(E,),
        in_specs=[
            # per-episode inputs: pipelined over the grid
            pl.BlockSpec((None, B, D), lambda e: (e, 0, 0)),
            pl.BlockSpec((None, S, D), lambda e: (e, 0, 0)),
            # weights/bias: constant block index -> stay resident in VMEM
            pl.BlockSpec((D, 4 * D), lambda e: (0, 0)),
            pl.BlockSpec((D, 4 * D), lambda e: (0, 0)),
            pl.BlockSpec((1, 4 * D), lambda e: (0, 0)),
        ],
        out_specs=pl.BlockSpec((None, B, D), lambda e: (e, 0, 0)),
    )

    return pl.pallas_call(
        kernel,
        out_shape=jax.ShapeDtypeStruct((E, B, D), jnp.float32),
        grid_spec=grid_spec,
        compiler_params=pltpu.CompilerParams(
            dimension_semantics=("parallel",)),   # v7x: shard episodes across 2 TCs
    )(queries.astype(jnp.float32), support.astype(jnp.float32),
      wih_t, whh_t, bias)


def attention_lstm_reference(support, queries, w_ih, w_hh, b_ih, b_hh,
                             unrolling_steps: int, match_bf16: bool = False):
    """Pure-JAX reference mirroring the PyTorch module (single episode).

    match_bf16=True applies the same bf16 matmul-operand quantization as the
    kernel (f32 accumulation), isolating kernel-logic errors from the
    intentional precision change.
    """
    f32 = jnp.float32
    q = queries.astype(f32)
    s = support.astype(f32)
    B, D = q.shape

    cast = (lambda x: x.astype(jnp.bfloat16)) if match_bf16 else (lambda x: x)
    wih_t = cast(jnp.asarray(w_ih, f32).T)
    whh_t = cast(jnp.asarray(w_hh, f32).T)
    bias = (jnp.asarray(b_ih, f32) + jnp.asarray(b_hh, f32)).reshape(1, -1)
    s_m = cast(s)

    gates_q = jnp.dot(cast(q), wih_t, preferred_element_type=f32) + bias

    h_hat = jnp.zeros((B, D), f32)
    c = jnp.zeros((B, D), f32)
    for _ in range(unrolling_steps):
        h = h_hat + q
        logits = jax.lax.dot_general(cast(h), s_m, (((1,), (1,)), ((), ())),
                                     preferred_element_type=f32)
        attn = jax.nn.softmax(logits, axis=1)
        readout = jnp.dot(cast(attn), s_m, preferred_element_type=f32)
        hx = cast(h + readout)
        gates = gates_q + jnp.dot(hx, whh_t, preferred_element_type=f32)
        i_g, f_g, g_g, o_g = jnp.split(gates, 4, axis=1)
        c = jax.nn.sigmoid(f_g) * c + jax.nn.sigmoid(i_g) * jnp.tanh(g_g)
        h_hat = jax.nn.sigmoid(o_g) * jnp.tanh(c)
    return h_hat + q


if __name__ == "__main__":
    # Small synthetic problem: D == "size" (input == hidden, per the module).
    E = 4            # episodes (grid axis)
    B = 8            # number of queries per episode
    S = 16           # number of support examples per episode
    D = 128          # embedding / hidden size
    UNROLLING_STEPS = 3

    key = jax.random.PRNGKey(0)
    kq, ks, k1, k2, k3, k4 = jax.random.split(key, 6)

    queries = jax.random.normal(kq, (E, B, D), jnp.float32)
    support = jax.random.normal(ks, (E, S, D), jnp.float32)

    # Deterministic LSTMCell params, PyTorch-style uniform(-1/sqrt(H), 1/sqrt(H)).
    bound = 1.0 / jnp.sqrt(jnp.float32(D))
    w_ih = jax.random.uniform(k1, (4 * D, D), jnp.float32, -bound, bound)
    w_hh = jax.random.uniform(k2, (4 * D, D), jnp.float32, -bound, bound)
    b_ih = jax.random.uniform(k3, (4 * D,), jnp.float32, -bound, bound)
    b_hh = jax.random.uniform(k4, (4 * D,), jnp.float32, -bound, bound)

    wih_t, whh_t, bias = prepare_params(w_ih, w_hh, b_ih, b_hh)

    out = attention_lstm_forward(support, queries, wih_t, whh_t, bias,
                                 unrolling_steps=UNROLLING_STEPS)
    out = jax.block_until_ready(out)
    assert out.shape == (E, B, D) and out.dtype == jnp.float32

    # Strict check against a quantization-matched reference (kernel logic).
    ref_match = jnp.stack([
        attention_lstm_reference(support[e], queries[e], w_ih, w_hh, b_ih, b_hh,
                                 UNROLLING_STEPS, match_bf16=True)
        for e in range(E)])
    ref_match = jax.block_until_ready(ref_match)
    err_match = float(jnp.max(jnp.abs(out - ref_match)))
    assert err_match < 5e-3, f"kernel vs bf16-matched reference: {err_match}"

    # Sanity bound against the exact f32 reference (bf16 MXU operands give
    # bounded quantization drift over the 3-step recurrence).
    ref_f32 = jnp.stack([
        attention_lstm_reference(support[e], queries[e], w_ih, w_hh, b_ih, b_hh,
                                 UNROLLING_STEPS, match_bf16=False)
        for e in range(E)])
    ref_f32 = jax.block_until_ready(ref_f32)
    err_f32 = float(jnp.max(jnp.abs(out - ref_f32)))
    assert err_f32 < 0.25, f"kernel vs f32 reference drifted too far: {err_f32}"

    print("KERNEL_OK")
</pallas_src>

<mosaic_0001>
module attributes {stable_mosaic.version = 11 : i64} {
  func.func @_attn_lstm_kernel(%arg0: i32, %arg1: memref<1x8x128xf32, #tpu.memory_space<vmem>>, %arg2: memref<1x16x128xf32, #tpu.memory_space<vmem>>, %arg3: memref<128x512xbf16, #tpu.memory_space<vmem>>, %arg4: memref<128x512xbf16, #tpu.memory_space<vmem>>, %arg5: memref<1x512xf32, #tpu.memory_space<vmem>>, %arg6: memref<1x8x128xf32, #tpu.memory_space<vmem>>) attributes {dimension_semantics = [#tpu.dimension_semantics<parallel>], iteration_bounds = array<i64: 4>, scalar_prefetch = 0 : i64, scratch_operands = 0 : i64, tpu.core_type = #tpu.core_type<tc>, window_params = [{transform_indices = @transform_0, window_bounds = array<i64: 1, 8, 128>}, {transform_indices = @transform_1, window_bounds = array<i64: 1, 16, 128>}, {pipeline_mode = #tpu.pipeline_mode<synchronous>, transform_indices = @transform_2, window_bounds = array<i64: 128, 512>}, {pipeline_mode = #tpu.pipeline_mode<synchronous>, transform_indices = @transform_3, window_bounds = array<i64: 128, 512>}, {pipeline_mode = #tpu.pipeline_mode<synchronous>, transform_indices = @transform_4, window_bounds = array<i64: 1, 512>}, {transform_indices = @transform_5, window_bounds = array<i64: 1, 8, 128>}]} {
    %c0 = arith.constant 0 : index
    %c0_0 = arith.constant 0 : index
    %c0_1 = arith.constant 0 : index
    %0 = vector.load %arg1[%c0, %c0_0, %c0_1] : memref<1x8x128xf32, #tpu.memory_space<vmem>>, vector<1x8x128xf32>
    %1 = vector.shape_cast %0 : vector<1x8x128xf32> to vector<8x128xf32>
    %2 = arith.truncf %1 : vector<8x128xf32> to vector<8x128xbf16>
    %c0_2 = arith.constant 0 : index
    %c0_3 = arith.constant 0 : index
    %c0_4 = arith.constant 0 : index
    %3 = vector.load %arg2[%c0_2, %c0_3, %c0_4] : memref<1x16x128xf32, #tpu.memory_space<vmem>>, vector<1x16x128xf32>
    %4 = vector.shape_cast %3 : vector<1x16x128xf32> to vector<16x128xf32>
    %5 = arith.truncf %4 : vector<16x128xf32> to vector<16x128xbf16>
    %c0_5 = arith.constant 0 : index
    %c0_6 = arith.constant 0 : index
    %6 = vector.load %arg3[%c0_5, %c0_6] : memref<128x512xbf16, #tpu.memory_space<vmem>>, vector<128x512xbf16>
    %c0_7 = arith.constant 0 : index
    %c0_8 = arith.constant 0 : index
    %7 = vector.load %arg4[%c0_7, %c0_8] : memref<128x512xbf16, #tpu.memory_space<vmem>>, vector<128x512xbf16>
    %c0_9 = arith.constant 0 : index
    %c0_10 = arith.constant 0 : index
    %8 = vector.load %arg5[%c0_9, %c0_10] : memref<1x512xf32, #tpu.memory_space<vmem>>, vector<1x512xf32>
    %cst = arith.constant dense<0.000000e+00> : vector<8x512xf32>
    %9 = tpu.matmul %2, %6, %cst {dimension_numbers = #tpu.dot_dimension_numbers<[1], [0], [0], [1], [0, 0, 1, 1], [], []>} : vector<8x128xbf16>, vector<128x512xbf16>, vector<8x512xf32> -> vector<8x512xf32>
    %10 = vector.broadcast %8 : vector<1x512xf32> to vector<8x512xf32>
    %11 = arith.addf %9, %10 : vector<8x512xf32>
    %cst_11 = arith.constant 0.000000e+00 : f32
    %12 = vector.broadcast %cst_11 : f32 to vector<8x128xf32>
    %cst_12 = arith.constant 0.000000e+00 : f32
    %13 = vector.broadcast %cst_12 : f32 to vector<8x128xf32>
    %14 = arith.addf %12, %1 : vector<8x128xf32>
    %15 = arith.truncf %14 : vector<8x128xf32> to vector<8x128xbf16>
    %cst_13 = arith.constant dense<0.000000e+00> : vector<8x16xf32>
    %16 = tpu.matmul %15, %5, %cst_13 {dimension_numbers = #tpu.dot_dimension_numbers<[1], [1], [0], [0], [0, 0, 1, 0], [], []>} : vector<8x128xbf16>, vector<16x128xbf16>, vector<8x16xf32> -> vector<8x16xf32>
    %cst_14 = arith.constant dense<0xFF800000> : vector<8xf32>
    %17 = vector.multi_reduction <maximumf>, %16, %cst_14 [1] : vector<8x16xf32> to vector<8xf32>
    %18 = vector.shape_cast %17 : vector<8xf32> to vector<8x1xf32>
    %19 = vector.broadcast %18 : vector<8x1xf32> to vector<8x16xf32>
    %20 = arith.subf %16, %19 : vector<8x16xf32>
    %21 = math.exp %20 : vector<8x16xf32>
    %cst_15 = arith.constant dense<0.000000e+00> : vector<8xf32>
    %22 = vector.multi_reduction <add>, %21, %cst_15 [1] : vector<8x16xf32> to vector<8xf32>
    %23 = vector.shape_cast %22 : vector<8xf32> to vector<8x1xf32>
    %24 = tpu.reciprocal %23 {approx = true} : vector<8x1xf32> -> vector<8x1xf32>
    %25 = vector.broadcast %24 : vector<8x1xf32> to vector<8x16xf32>
    %26 = arith.mulf %21, %25 : vector<8x16xf32>
    %27 = arith.truncf %26 : vector<8x16xf32> to vector<8x16xbf16>
    %cst_16 = arith.constant dense<0.000000e+00> : vector<8x128xf32>
    %28 = tpu.matmul %27, %5, %cst_16 {dimension_numbers = #tpu.dot_dimension_numbers<[1], [0], [0], [1], [0, 0, 1, 1], [], []>} : vector<8x16xbf16>, vector<16x128xbf16>, vector<8x128xf32> -> vector<8x128xf32>
    %29 = arith.addf %14, %28 : vector<8x128xf32>
    %30 = arith.truncf %29 : vector<8x128xf32> to vector<8x128xbf16>
    %cst_17 = arith.constant dense<0.000000e+00> : vector<8x512xf32>
    %31 = tpu.matmul %30, %7, %cst_17 {dimension_numbers = #tpu.dot_dimension_numbers<[1], [0], [0], [1], [0, 0, 1, 1], [], []>} : vector<8x128xbf16>, vector<128x512xbf16>, vector<8x512xf32> -> vector<8x512xf32>
    %32 = arith.addf %11, %31 : vector<8x512xf32>
    %33 = vector.extract_strided_slice %32 {offsets = [0, 0], sizes = [8, 128], strides = [1, 1]} : vector<8x512xf32> to vector<8x128xf32>
    %34 = arith.negf %33 : vector<8x128xf32>
    %35 = math.exp %34 : vector<8x128xf32>
    %cst_18 = arith.constant 1.000000e+00 : f32
    %36 = vector.broadcast %cst_18 : f32 to vector<8x128xf32>
    %37 = arith.addf %36, %35 : vector<8x128xf32>
    %38 = arith.divf %36, %37 : vector<8x128xf32>
    %39 = vector.extract_strided_slice %32 {offsets = [0, 128], sizes = [8, 128], strides = [1, 1]} : vector<8x512xf32> to vector<8x128xf32>
    %40 = arith.negf %39 : vector<8x128xf32>
    %41 = math.exp %40 : vector<8x128xf32>
    %cst_19 = arith.constant 1.000000e+00 : f32
    %42 = vector.broadcast %cst_19 : f32 to vector<8x128xf32>
    %43 = arith.addf %42, %41 : vector<8x128xf32>
    %44 = arith.divf %42, %43 : vector<8x128xf32>
    %45 = vector.extract_strided_slice %32 {offsets = [0, 256], sizes = [8, 128], strides = [1, 1]} : vector<8x512xf32> to vector<8x128xf32>
    %46 = math.tanh %45 : vector<8x128xf32>
    %47 = vector.extract_strided_slice %32 {offsets = [0, 384], sizes = [8, 128], strides = [1, 1]} : vector<8x512xf32> to vector<8x128xf32>
    %48 = arith.negf %47 : vector<8x128xf32>
    %49 = math.exp %48 : vector<8x128xf32>
    %cst_20 = arith.constant 1.000000e+00 : f32
    %50 = vector.broadcast %cst_20 : f32 to vector<8x128xf32>
    %51 = arith.addf %50, %49 : vector<8x128xf32>
    %52 = arith.divf %50, %51 : vector<8x128xf32>
    %53 = arith.mulf %44, %13 : vector<8x128xf32>
    %54 = arith.mulf %38, %46 : vector<8x128xf32>
    %55 = arith.addf %53, %54 : vector<8x128xf32>
    %56 = math.tanh %55 : vector<8x128xf32>
    %57 = arith.mulf %52, %56 : vector<8x128xf32>
    %58 = arith.addf %57, %1 : vector<8x128xf32>
    %59 = arith.truncf %58 : vector<8x128xf32> to vector<8x128xbf16>
    %cst_21 = arith.constant dense<0.000000e+00> : vector<8x16xf32>
    %60 = tpu.matmul %59, %5, %cst_21 {dimension_numbers = #tpu.dot_dimension_numbers<[1], [1], [0], [0], [0, 0, 1, 0], [], []>} : vector<8x128xbf16>, vector<16x128xbf16>, vector<8x16xf32> -> vector<8x16xf32>
    %cst_22 = arith.constant dense<0xFF800000> : vector<8xf32>
    %61 = vector.multi_reduction <maximumf>, %60, %cst_22 [1] : vector<8x16xf32> to vector<8xf32>
    %62 = vector.shape_cast %61 : vector<8xf32> to vector<8x1xf32>
    %63 = vector.broadcast %62 : vector<8x1xf32> to vector<8x16xf32>
    %64 = arith.subf %60, %63 : vector<8x16xf32>
    %65 = math.exp %64 : vector<8x16xf32>
    %cst_23 = arith.constant dense<0.000000e+00> : vector<8xf32>
    %66 = vector.multi_reduction <add>, %65, %cst_23 [1] : vector<8x16xf32> to vector<8xf32>
    %67 = vector.shape_cast %66 : vector<8xf32> to vector<8x1xf32>
    %68 = tpu.reciprocal %67 {approx = true} : vector<8x1xf32> -> vector<8x1xf32>
    %69 = vector.broadcast %68 : vector<8x1xf32> to vector<8x16xf32>
    %70 = arith.mulf %65, %69 : vector<8x16xf32>
    %71 = arith.truncf %70 : vector<8x16xf32> to vector<8x16xbf16>
    %cst_24 = arith.constant dense<0.000000e+00> : vector<8x128xf32>
    %72 = tpu.matmul %71, %5, %cst_24 {dimension_numbers = #tpu.dot_dimension_numbers<[1], [0], [0], [1], [0, 0, 1, 1], [], []>} : vector<8x16xbf16>, vector<16x128xbf16>, vector<8x128xf32> -> vector<8x128xf32>
    %73 = arith.addf %58, %72 : vector<8x128xf32>
    %74 = arith.truncf %73 : vector<8x128xf32> to vector<8x128xbf16>
    %cst_25 = arith.constant dense<0.000000e+00> : vector<8x512xf32>
    %75 = tpu.matmul %74, %7, %cst_25 {dimension_numbers = #tpu.dot_dimension_numbers<[1], [0], [0], [1], [0, 0, 1, 1], [], []>} : vector<8x128xbf16>, vector<128x512xbf16>, vector<8x512xf32> -> vector<8x512xf32>
    %76 = arith.addf %11, %75 : vector<8x512xf32>
    %77 = vector.extract_strided_slice %76 {offsets = [0, 0], sizes = [8, 128], strides = [1, 1]} : vector<8x512xf32> to vector<8x128xf32>
    %78 = arith.negf %77 : vector<8x128xf32>
    %79 = math.exp %78 : vector<8x128xf32>
    %cst_26 = arith.constant 1.000000e+00 : f32
    %80 = vector.broadcast %cst_26 : f32 to vector<8x128xf32>
    %81 = arith.addf %80, %79 : vector<8x128xf32>
    %82 = arith.divf %80, %81 : vector<8x128xf32>
    %83 = vector.extract_strided_slice %76 {offsets = [0, 128], sizes = [8, 128], strides = [1, 1]} : vector<8x512xf32> to vector<8x128xf32>
    %84 = arith.negf %83 : vector<8x128xf32>
    %85 = math.exp %84 : vector<8x128xf32>
    %cst_27 = arith.constant 1.000000e+00 : f32
    %86 = vector.broadcast %cst_27 : f32 to vector<8x128xf32>
    %87 = arith.addf %86, %85 : vector<8x128xf32>
    %88 = arith.divf %86, %87 : vector<8x128xf32>
    %89 = vector.extract_strided_slice %76 {offsets = [0, 256], sizes = [8, 128], strides = [1, 1]} : vector<8x512xf32> to vector<8x128xf32>
    %90 = math.tanh %89 : vector<8x128xf32>
    %91 = vector.extract_strided_slice %76 {offsets = [0, 384], sizes = [8, 128], strides = [1, 1]} : vector<8x512xf32> to vector<8x128xf32>
    %92 = arith.negf %91 : vector<8x128xf32>
    %93 = math.exp %92 : vector<8x128xf32>
    %cst_28 = arith.constant 1.000000e+00 : f32
    %94 = vector.broadcast %cst_28 : f32 to vector<8x128xf32>
    %95 = arith.addf %94, %93 : vector<8x128xf32>
    %96 = arith.divf %94, %95 : vector<8x128xf32>
    %97 = arith.mulf %88, %55 : vector<8x128xf32>
    %98 = arith.mulf %82, %90 : vector<8x128xf32>
    %99 = arith.addf %97, %98 : vector<8x128xf32>
    %100 = math.tanh %99 : vector<8x128xf32>
    %101 = arith.mulf %96, %100 : vector<8x128xf32>
    %102 = arith.addf %101, %1 : vector<8x128xf32>
    %103 = arith.truncf %102 : vector<8x128xf32> to vector<8x128xbf16>
    %cst_29 = arith.constant dense<0.000000e+00> : vector<8x16xf32>
    %104 = tpu.matmul %103, %5, %cst_29 {dimension_numbers = #tpu.dot_dimension_numbers<[1], [1], [0], [0], [0, 0, 1, 0], [], []>} : vector<8x128xbf16>, vector<16x128xbf16>, vector<8x16xf32> -> vector<8x16xf32>
    %cst_30 = arith.constant dense<0xFF800000> : vector<8xf32>
    %105 = vector.multi_reduction <maximumf>, %104, %cst_30 [1] : vector<8x16xf32> to vector<8xf32>
    %106 = vector.shape_cast %105 : vector<8xf32> to vector<8x1xf32>
    %107 = vector.broadcast %106 : vector<8x1xf32> to vector<8x16xf32>
    %108 = arith.subf %104, %107 : vector<8x16xf32>
    %109 = math.exp %108 : vector<8x16xf32>
    %cst_31 = arith.constant dense<0.000000e+00> : vector<8xf32>
    %110 = vector.multi_reduction <add>, %109, %cst_31 [1] : vector<8x16xf32> to vector<8xf32>
    %111 = vector.shape_cast %110 : vector<8xf32> to vector<8x1xf32>
    %112 = tpu.reciprocal %111 {approx = true} : vector<8x1xf32> -> vector<8x1xf32>
    %113 = vector.broadcast %112 : vector<8x1xf32> to vector<8x16xf32>
    %114 = arith.mulf %109, %113 : vector<8x16xf32>
    %115 = arith.truncf %114 : vector<8x16xf32> to vector<8x16xbf16>
    %cst_32 = arith.constant dense<0.000000e+00> : vector<8x128xf32>
    %116 = tpu.matmul %115, %5, %cst_32 {dimension_numbers = #tpu.dot_dimension_numbers<[1], [0], [0], [1], [0, 0, 1, 1], [], []>} : vector<8x16xbf16>, vector<16x128xbf16>, vector<8x128xf32> -> vector<8x128xf32>
    %117 = arith.addf %102, %116 : vector<8x128xf32>
    %118 = arith.truncf %117 : vector<8x128xf32> to vector<8x128xbf16>
    %cst_33 = arith.constant dense<0.000000e+00> : vector<8x512xf32>
    %119 = tpu.matmul %118, %7, %cst_33 {dimension_numbers = #tpu.dot_dimension_numbers<[1], [0], [0], [1], [0, 0, 1, 1], [], []>} : vector<8x128xbf16>, vector<128x512xbf16>, vector<8x512xf32> -> vector<8x512xf32>
    %120 = arith.addf %11, %119 : vector<8x512xf32>
    %121 = vector.extract_strided_slice %120 {offsets = [0, 0], sizes = [8, 128], strides = [1, 1]} : vector<8x512xf32> to vector<8x128xf32>
    %122 = arith.negf %121 : vector<8x128xf32>
    %123 = math.exp %122 : vector<8x128xf32>
    %cst_34 = arith.constant 1.000000e+00 : f32
    %124 = vector.broadcast %cst_34 : f32 to vector<8x128xf32>
    %125 = arith.addf %124, %123 : vector<8x128xf32>
    %126 = arith.divf %124, %125 : vector<8x128xf32>
    %127 = vector.extract_strided_slice %120 {offsets = [0, 128], sizes = [8, 128], strides = [1, 1]} : vector<8x512xf32> to vector<8x128xf32>
    %128 = arith.negf %127 : vector<8x128xf32>
    %129 = math.exp %128 : vector<8x128xf32>
    %cst_35 = arith.constant 1.000000e+00 : f32
    %130 = vector.broadcast %cst_35 : f32 to vector<8x128xf32>
    %131 = arith.addf %130, %129 : vector<8x128xf32>
    %132 = arith.divf %130, %131 : vector<8x128xf32>
    %133 = vector.extract_strided_slice %120 {offsets = [0, 256], sizes = [8, 128], strides = [1, 1]} : vector<8x512xf32> to vector<8x128xf32>
    %134 = math.tanh %133 : vector<8x128xf32>
    %135 = vector.extract_strided_slice %120 {offsets = [0, 384], sizes = [8, 128], strides = [1, 1]} : vector<8x512xf32> to vector<8x128xf32>
    %136 = arith.negf %135 : vector<8x128xf32>
    %137 = math.exp %136 : vector<8x128xf32>
    %cst_36 = arith.constant 1.000000e+00 : f32
    %138 = vector.broadcast %cst_36 : f32 to vector<8x128xf32>
    %139 = arith.addf %138, %137 : vector<8x128xf32>
    %140 = arith.divf %138, %139 : vector<8x128xf32>
    %141 = arith.mulf %132, %99 : vector<8x128xf32>
    %142 = arith.mulf %126, %134 : vector<8x128xf32>
    %143 = arith.addf %141, %142 : vector<8x128xf32>
    %144 = math.tanh %143 : vector<8x128xf32>
    %145 = arith.mulf %140, %144 : vector<8x128xf32>
    %146 = arith.addf %145, %1 : vector<8x128xf32>
    %c0_37 = arith.constant 0 : index
    %c0_38 = arith.constant 0 : index
    %c0_39 = arith.constant 0 : index
    %147 = vector.load %arg6[%c0_37, %c0_38, %c0_39] : memref<1x8x128xf32, #tpu.memory_space<vmem>>, vector<1x8x128xf32>
    %148 = vector.shape_cast %147 : vector<1x8x128xf32> to vector<8x128xf32>
    %149 = vector.shape_cast %146 : vector<8x128xf32> to vector<1x8x128xf32>
    tpu.vector_store %arg6[%c0_37, %c0_38, %c0_39], %149 {strides = array<i32>} : memref<1x8x128xf32, #tpu.memory_space<vmem>>, vector<1x8x128xf32>,
    return
  }
  func.func @transform_0(%arg0: i32) -> (i32, i32, i32) {
    %c0_i32 = arith.constant 0 : i32
    %c0_i32_0 = arith.constant 0 : i32
    %c0_i32_1 = arith.constant 0 : i32
    return %arg0, %c0_i32, %c0_i32_0 : i32, i32, i32
  }
  func.func @transform_1(%arg0: i32) -> (i32, i32, i32) {
    %c0_i32 = arith.constant 0 : i32
    %c0_i32_0 = arith.constant 0 : i32
    %c0_i32_1 = arith.constant 0 : i32
    return %arg0, %c0_i32, %c0_i32_0 : i32, i32, i32
  }
  func.func @transform_2(%arg0: i32) -> (i32, i32) {
    %c0_i32 = arith.constant 0 : i32
    %c0_i32_0 = arith.constant 0 : i32
    %c0_i32_1 = arith.constant 0 : i32
    return %c0_i32, %c0_i32_0 : i32, i32
  }
  func.func @transform_3(%arg0: i32) -> (i32, i32) {
    %c0_i32 = arith.constant 0 : i32
    %c0_i32_0 = arith.constant 0 : i32
    %c0_i32_1 = arith.constant 0 : i32
    return %c0_i32, %c0_i32_0 : i32, i32
  }
  func.func @transform_4(%arg0: i32) -> (i32, i32) {
    %c0_i32 = arith.constant 0 : i32
    %c0_i32_0 = arith.constant 0 : i32
    %c0_i32_1 = arith.constant 0 : i32
    return %c0_i32, %c0_i32_0 : i32, i32
  }
  func.func @transform_5(%arg0: i32) -> (i32, i32, i32) {
    %c0_i32 = arith.constant 0 : i32
    %c0_i32_0 = arith.constant 0 : i32
    %c0_i32_1 = arith.constant 0 : i32
    return %arg0, %c0_i32, %c0_i32_0 : i32, i32, i32
  }
}

</mosaic_0001>

<llo_original>
// kernel: tpu_custom_call.1
$region0: #{tpu_custom_call.1}
  #allocation0 [shape = 'u32[]', space=smem, size = 0x4, offset = 0x4, fixed_abs, tag = 'smem constant byte address 0x4 - core index']
  #allocation1 [shape = 'u32[144,128]{1,0:T(1,128)}', space=vmem, size = 0x12000, scoped, tag = 'internal scratch']
  %s0 = inlined_call_operand.hbm [shape: f32[4,8,128], index: 0, kind: input, shape index: {}]
  %s1 = inlined_call_operand.hbm [shape: f32[4,16,128], index: 1, kind: input, shape index: {}]
  %s2 = inlined_call_operand.hbm [shape: bf16[128,512], index: 2, kind: input, shape index: {}]
  %s3 = inlined_call_operand.hbm [shape: bf16[128,512], index: 3, kind: input, shape index: {}]
  %s4 = inlined_call_operand.vmem [shape: f32[1,512], index: 4, kind: input, shape index: {}]
  %s5 = inlined_call_operand.hbm [shape: f32[4,8,128], index: 5, kind: output, shape index: {}]
  %s6 = sld [smem:[#allocation0]]
  $region69: #{tpu_custom_call.1} parent=0
    _
  %s8 = ssub.s32 1, %s6
  %s9 = scalar_select 0, %s8, %s6
  $region1: #{tpu_custom_call.1} parent=0
    #allocation2 [shape = 'u8[8192]{0}', space=vmem, size = 0x2000, scoped, tag = 'input window, operand 0']
    #allocation3 [shape = 's32[2]{0}', space=sflag, size = 0x8, scoped, tag = 'scoped memory for tpu_custom_call.1']
    #allocation4 [shape = 's32[2]{0}', space=sflag, size = 0x8, scoped, tag = 'scoped memory for tpu_custom_call.1']
    #allocation5 [shape = 'u8[16384]{0}', space=vmem, size = 0x4000, scoped, tag = 'input window, operand 1']
    #allocation6 [shape = 's32[2]{0}', space=sflag, size = 0x8, scoped, tag = 'scoped memory for tpu_custom_call.1']
    #allocation7 [shape = 'u8[131072]{0}', space=vmem, size = 0x20000, scoped, tag = 'input window, operand 2, single buffered']
    #allocation8 [shape = 'u8[131072]{0}', space=vmem, size = 0x20000, scoped, tag = 'input window, operand 3, single buffered']
    #allocation9 [shape = 's32[1]{0}', space=sflag, size = 0x4, scoped, tag = 'scoped memory for tpu_custom_call.1']
    #allocation10 [shape = 'u8[8192]{0}', space=vmem, size = 0x2000, scoped, tag = 'output window, operand 0']
    %10 = vsyncpa [#allocation3], 0
    %s11 = scalar_lea.sflag [#allocation3], 1
    %12 = vsyncpa %s11, 0
    %13 = vsyncpa [#allocation6], 0
    %s14 = scalar_lea.sflag [#allocation6], 1
    %15 = vsyncpa %s14, 0
    %16 = vsyncpa [#allocation9], 0
    %17 = vsyncpa [#allocation4], 0
    %s18 = scalar_lea.sflag [#allocation4], 1
    %19 = vsyncpa %s18, 0
    loop: start=0, step=1, limit=6
    $region2: #{tpu_custom_call.1} parent=1 // loop_pre_header
      _
    $region3: #{tpu_custom_call.1} parent=1 // loop_header
      %s21 = sphi 0, %s25
      %p22 = scmp.ge.s32.totalorder %s21, 6
      %s31 = sphi 0, %s33
      %s34 = sphi 0, %s31
      %s35 = sphi 0, %s34
      %s51 = sphi 0, %s35
      %s57 = sphi 0, %s59
      %s60 = sphi 0, %s57
      %s61 = sphi 0, %s60
      %s77 = sphi 0, %s61
      %s81 = sphi 0, %s81
      %s83 = sphi 0, %s81
      %s84 = sphi 0, %s83
      %s98 = sphi 0, %s84
      %s102 = sphi 0, %s102
      %s104 = sphi 0, %s102
      %s105 = sphi 0, %s104
      %s119 = sphi 0, %s105
      %s123 = sphi 0, %s123
      %s125 = sphi 0, %s123
      %s126 = sphi 0, %s125
      %s140 = sphi 0, %s126
      %s146 = sphi 0, %s148
      %s149 = sphi 0, %s146
      %s150 = sphi 0, %s149
      %s166 = sphi 0, %s150
    $region4: #{tpu_custom_call.1} parent=1 // loop_header_branch
      %24 = sbr.rel (%p22) target = $region8
    $region5: #{tpu_custom_call.1} parent=1 // loop_body
      %s26 = ssub.s32 %s21, 1
      %s27 = ssub.s32 %s21, 2
      %s28 = sadd.s32 %s21, 1
      %s29 = ssub.s32 %s21, %s28
      %p30 = scmp.eq.s32.totalorder %s29, 0
      %s32 = sadd.s32 %s31, 1
      %s33 = scalar_select %p30, %s31, %s32
      %p36 = pneg %p30
      %p37 = scmp.eq.s32.totalorder %s21, 3
      %p38 = por %p36, %p37
      %p39 = scmp.ne.s32.totalorder %s31, %s34
      %p40 = scmp.eq.s32.totalorder %s21, 0
      %p41 = por %p39, %p40
      %p42 = scmp.ne.s32.totalorder %s31, %s34
      %p43 = scmp.eq.s32.totalorder %s26, 3
      %p44 = por %p42, %p43
      %p45 = scmp.ne.s32.totalorder %s34, %s35
      %p46 = scmp.eq.s32.totalorder %s26, 0
      %p47 = por %p45, %p46
      %p48 = scmp.ne.s32.totalorder %s34, %s35
      %p49 = scmp.eq.s32.totalorder %s27, 3
      %p50 = por %p48, %p49
      %p52 = scmp.ne.s32.totalorder %s35, %s51
      %p53 = scmp.eq.s32.totalorder %s27, 0
      %p54 = por %p52, %p53
      %s55 = ssub.s32 %s21, %s28
      %p56 = scmp.eq.s32.totalorder %s55, 0
      %s58 = sadd.s32 %s57, 1
      %s59 = scalar_select %p56, %s57, %s58
      %p62 = pneg %p56
      %p63 = scmp.eq.s32.totalorder %s21, 3
      %p64 = por %p62, %p63
      %p65 = scmp.ne.s32.totalorder %s57, %s60
      %p66 = scmp.eq.s32.totalorder %s21, 0
      %p67 = por %p65, %p66
      %p68 = scmp.ne.s32.totalorder %s57, %s60
      %p69 = scmp.eq.s32.totalorder %s26, 3
      %p70 = por %p68, %p69
      %p71 = scmp.ne.s32.totalorder %s60, %s61
      %p72 = scmp.eq.s32.totalorder %s26, 0
      %p73 = por %p71, %p72
      %p74 = scmp.ne.s32.totalorder %s60, %s61
      %p75 = scmp.eq.s32.totalorder %s27, 3
      %p76 = por %p74, %p75
      %p78 = scmp.ne.s32.totalorder %s61, %s77
      %p79 = scmp.eq.s32.totalorder %s27, 0
      %p80 = por %p78, %p79
      %s82 = sadd.s32 %s81, 1
      %p85 = scmp.eq.s32.totalorder %s21, 3
      %p86 = scmp.ne.s32.totalorder %s81, %s83
      %p87 = scmp.eq.s32.totalorder %s21, 0
      %p88 = por %p86, %p87
      %p89 = scmp.ne.s32.totalorder %s81, %s83
      %p90 = scmp.eq.s32.totalorder %s26, 3
      %p91 = por %p89, %p90
      %p92 = scmp.ne.s32.totalorder %s83, %s84
      %p93 = scmp.eq.s32.totalorder %s26, 0
      %p94 = por %p92, %p93
      %p95 = scmp.ne.s32.totalorder %s83, %s84
      %p96 = scmp.eq.s32.totalorder %s27, 3
      %p97 = por %p95, %p96
      %p99 = scmp.ne.s32.totalorder %s84, %s98
      %p100 = scmp.eq.s32.totalorder %s27, 0
      %p101 = por %p99, %p100
      %s103 = sadd.s32 %s102, 1
      %p106 = scmp.eq.s32.totalorder %s21, 3
      %p107 = scmp.ne.s32.totalorder %s102, %s104
      %p108 = scmp.eq.s32.totalorder %s21, 0
      %p109 = por %p107, %p108
      %p110 = scmp.ne.s32.totalorder %s102, %s104
      %p111 = scmp.eq.s32.totalorder %s26, 3
      %p112 = por %p110, %p111
      %p113 = scmp.ne.s32.totalorder %s104, %s105
      %p114 = scmp.eq.s32.totalorder %s26, 0
      %p115 = por %p113, %p114
      %p116 = scmp.ne.s32.totalorder %s104, %s105
      %p117 = scmp.eq.s32.totalorder %s27, 3
      %p118 = por %p116, %p117
      %p120 = scmp.ne.s32.totalorder %s105, %s119
      %p121 = scmp.eq.s32.totalorder %s27, 0
      %p122 = por %p120, %p121
      %s124 = sadd.s32 %s123, 1
      %p127 = scmp.eq.s32.totalorder %s21, 3
      %p128 = scmp.ne.s32.totalorder %s123, %s125
      %p129 = scmp.eq.s32.totalorder %s21, 0
      %p130 = por %p128, %p129
      %p131 = scmp.ne.s32.totalorder %s123, %s125
      %p132 = scmp.eq.s32.totalorder %s26, 3
      %p133 = por %p131, %p132
      %p134 = scmp.ne.s32.totalorder %s125, %s126
      %p135 = scmp.eq.s32.totalorder %s26, 0
      %p136 = por %p134, %p135
      %p137 = scmp.ne.s32.totalorder %s125, %s126
      %p138 = scmp.eq.s32.totalorder %s27, 3
      %p139 = por %p137, %p138
      %p141 = scmp.ne.s32.totalorder %s126, %s140
      %p142 = scmp.eq.s32.totalorder %s27, 0
      %p143 = por %p141, %p142
      %s144 = ssub.s32 %s21, %s28
      %p145 = scmp.eq.s32.totalorder %s144, 0
      %s147 = sadd.s32 %s146, 1
      %s148 = scalar_select %p145, %s146, %s147
      %p151 = pneg %p145
      %p152 = scmp.eq.s32.totalorder %s21, 3
      %p153 = por %p151, %p152
      %p154 = scmp.ne.s32.totalorder %s146, %s149
      %p155 = scmp.eq.s32.totalorder %s21, 0
      %p156 = por %p154, %p155
      %p157 = scmp.ne.s32.totalorder %s146, %s149
      %p158 = scmp.eq.s32.totalorder %s26, 3
      %p159 = por %p157, %p158
      %p160 = scmp.ne.s32.totalorder %s149, %s150
      %p161 = scmp.eq.s32.totalorder %s26, 0
      %p162 = por %p160, %p161
      %p163 = scmp.ne.s32.totalorder %s149, %s150
      %p164 = scmp.eq.s32.totalorder %s27, 3
      %p165 = por %p163, %p164
      %p167 = scmp.ne.s32.totalorder %s150, %s166
      %p168 = scmp.eq.s32.totalorder %s27, 0
      %p169 = por %p167, %p168
      %p170 = scmp.le.s32.totalorder 1, %s21
      %p171 = scmp.lt.s32.totalorder %s21, 5
      %p172 = pnand %p170, %p171
      %p173 = pneg %p172
      // Predicated region
      $region9: #{tpu_custom_call.1} parent=5 // pred_check
        _
      $region10: #{tpu_custom_call.1} parent=5 // pred_check_branch
        %175 = sbr.rel (%p172) target = $region12
      $region11: #{tpu_custom_call.1} parent=5 // pred_region
        %s176 = ssub.s32 %s21, 1
        // Predicated region
        $region13: #{tpu_custom_call.1} parent=11 // pred_check
          %p177 = pneg %p94
        $region14: #{tpu_custom_call.1} parent=11 // pred_check_branch
          %179 = sbr.rel (%p177) target = $region16
        $region15: #{tpu_custom_call.1} parent=11 // pred_region
          %s181 = ssub.s32 4096, 4096
          %182 = vsyncadd [#allocation6], %s181
          %s183 = sshll.u32 [#allocation7], 4
          %s184 = int_to_ptr.vmem [resolvable:$true] %s183
          %189 = dma.hbm_to_vmem [thread:$0]  %s2, 4096, %s184, [#allocation6], 256, 256, 16
        $region16: #{tpu_custom_call.1} parent=11 // pred_fallthru
          _
        // Predicated region
        $region17: #{tpu_custom_call.1} parent=11 // pred_check
          %p190 = pneg %p115
        $region18: #{tpu_custom_call.1} parent=11 // pred_check_branch
          %192 = sbr.rel (%p190) target = $region20
        $region19: #{tpu_custom_call.1} parent=11 // pred_region
          %s194 = ssub.s32 4096, 4096
          %195 = vsyncadd [#allocation9], %s194
          %s196 = sshll.u32 [#allocation8], 4
          %s197 = int_to_ptr.vmem [resolvable:$true] %s196
          %202 = dma.hbm_to_vmem [thread:$0]  %s3, 4096, %s197, [#allocation9], 256, 256, 16
        $region20: #{tpu_custom_call.1} parent=11 // pred_fallthru
          _
        // Predicated region
        $region21: #{tpu_custom_call.1} parent=11 // pred_check
          %p203 = pneg %p136
        $region22: #{tpu_custom_call.1} parent=11 // pred_check_branch
          %205 = sbr.rel (%p203) target = $region24
        $region23: #{tpu_custom_call.1} parent=11 // pred_region
          _
        $region24: #{tpu_custom_call.1} parent=11 // pred_fallthru
          _
      $region12: #{tpu_custom_call.1} parent=5 // pred_fallthru
        _
      %p206 = scmp.lt.s32.totalorder %s21, 4
      // Predicated region
      $region25: #{tpu_custom_call.1} parent=5 // pred_check
        %p207 = pneg %p206
      $region26: #{tpu_custom_call.1} parent=5 // pred_check_branch
        %209 = sbr.rel (%p207) target = $region28
      $region27: #{tpu_custom_call.1} parent=5 // pred_region
        // Predicated region
        $region29: #{tpu_custom_call.1} parent=27 // pred_check
          %p210 = pneg %p41
        $region30: #{tpu_custom_call.1} parent=27 // pred_check_branch
          %212 = sbr.rel (%p210) target = $region32
        $region31: #{tpu_custom_call.1} parent=27 // pred_region
          %s213 = sand.u32 %s31, 1
          %s214 = scalar_lea.sflag [#allocation3], %s213
          %s215 = sand.u32 %s31, 1
          %s216 = smul.addr %s215, 8
          %s217 = scalar_lea.vmem [#allocation2], %s216
          %s219 = ssub.s32 128, 128
          %220 = vsyncadd %s214, %s219
          %s221 = smul.addr %s21, 128
          %s222 = scalar_lea.hbm %s0, %s221
          %s224 = sshll.u32 %s217, 4
          %s225 = int_to_ptr.vmem [resolvable:$true] %s224
          %227 = dma.hbm_to_vmem [thread:$0]  %s222, 128, %s225, %s214
        $region32: #{tpu_custom_call.1} parent=27 // pred_fallthru
          _
        // Predicated region
        $region33: #{tpu_custom_call.1} parent=27 // pred_check
          %p228 = pneg %p67
        $region34: #{tpu_custom_call.1} parent=27 // pred_check_branch
          %230 = sbr.rel (%p228) target = $region36
        $region35: #{tpu_custom_call.1} parent=27 // pred_region
          %s231 = sand.u32 %s21, 1
          %s232 = scalar_lea.sflag [#allocation6], %s231
          %s233 = sand.u32 %s57, 1
          %s234 = smul.addr %s233, 16
          %s235 = scalar_lea.vmem [#allocation5], %s234
          %s237 = ssub.s32 256, 256
          %238 = vsyncadd %s232, %s237
          %s239 = smul.addr %s21, 2
          %s240 = smul.addr %s239, 128
          %s241 = scalar_lea.hbm %s1, %s240
          %s242 = sshll.u32 %s235, 4
          %s243 = int_to_ptr.vmem [resolvable:$true] %s242
          %248 = dma.hbm_to_vmem [thread:$0]  %s241, 256, %s243, %s232, 128, 128, 8
        $region36: #{tpu_custom_call.1} parent=27 // pred_fallthru
          _
      $region28: #{tpu_custom_call.1} parent=5 // pred_fallthru
        _
      %p249 = scmp.le.s32.totalorder 1, %s21
      %p250 = scmp.lt.s32.totalorder %s21, 5
      %p251 = pnand %p249, %p250
      %p252 = pneg %p251
      // Predicated region
      $region37: #{tpu_custom_call.1} parent=5 // pred_check
        _
      $region38: #{tpu_custom_call.1} parent=5 // pred_check_branch
        %254 = sbr.rel (%p251) target = $region40
      $region39: #{tpu_custom_call.1} parent=5 // pred_region
        %s255 = ssub.s32 %s21, 1
        %s256 = sand.u32 %s34, 1
        %s257 = scalar_lea.sflag [#allocation3], %s256
        %s258 = sand.u32 %s34, 1
        %s259 = smul.addr %s258, 8
        %s260 = scalar_lea.vmem [#allocation2], %s259
        // Predicated region
        $region41: #{tpu_custom_call.1} parent=39 // pred_check
          %p261 = pneg %p47
        $region42: #{tpu_custom_call.1} parent=39 // pred_check_branch
          %263 = sbr.rel (%p261) target = $region44
        $region43: #{tpu_custom_call.1} parent=39 // pred_region
          %264 = dma.done %s257, 128
        $region44: #{tpu_custom_call.1} parent=39 // pred_fallthru
          _
        %s265 = sand.u32 %s26, 1
        %s266 = scalar_lea.sflag [#allocation6], %s265
        %s267 = sand.u32 %s60, 1
        %s268 = smul.addr %s267, 16
        %s269 = scalar_lea.vmem [#allocation5], %s268
        // Predicated region
        $region45: #{tpu_custom_call.1} parent=39 // pred_check
          %p270 = pneg %p73
        $region46: #{tpu_custom_call.1} parent=39 // pred_check_branch
          %272 = sbr.rel (%p270) target = $region48
        $region47: #{tpu_custom_call.1} parent=39 // pred_region
          %273 = dma.done %s266, 256
        $region48: #{tpu_custom_call.1} parent=39 // pred_fallthru
          _
        // Predicated region
        $region49: #{tpu_custom_call.1} parent=39 // pred_check
          %p274 = pneg %p94
        $region50: #{tpu_custom_call.1} parent=39 // pred_check_branch
          %276 = sbr.rel (%p274) target = $region52
        $region51: #{tpu_custom_call.1} parent=39 // pred_region
          %277 = dma.done [#allocation6], 4096
        $region52: #{tpu_custom_call.1} parent=39 // pred_fallthru
          _
        // Predicated region
        $region53: #{tpu_custom_call.1} parent=39 // pred_check
          %p278 = pneg %p115
        $region54: #{tpu_custom_call.1} parent=39 // pred_check_branch
          %280 = sbr.rel (%p278) target = $region56
        $region55: #{tpu_custom_call.1} parent=39 // pred_region
          %281 = dma.done [#allocation9], 4096
        $region56: #{tpu_custom_call.1} parent=39 // pred_fallthru
          _
        %s282 = sand.u32 %s34, 1
        %s283 = scalar_lea.sflag [#allocation3], %s282
        %s284 = sand.u32 %s34, 1
        %s285 = smul.addr %s284, 8
        %s286 = scalar_lea.vmem [#allocation2], %s285
        %p287 = pneg %p47
        %p288 = pneg %p44
        %s289 = sand.u32 %s26, 1
        %s290 = scalar_lea.sflag [#allocation6], %s289
        %s291 = sand.u32 %s60, 1
        %s292 = smul.addr %s291, 16
        %s293 = scalar_lea.vmem [#allocation5], %s292
        %p294 = pneg %p73
        %p295 = pneg %p70
        %p296 = pneg %p94
        %p297 = pneg %p91
        %p298 = pneg %p115
        %p299 = pneg %p112
        %p300 = pneg %p136
        %p301 = pneg %p133
        %p302 = pneg %p162
        %p303 = pneg %p159
        %s304 = sand.u32 %s149, 1
        %s305 = scalar_lea.sflag [#allocation4], %s304
        %s306 = sand.u32 %s149, 1
        %s307 = smul.addr %s306, 8
        %s308 = scalar_lea.vmem [#allocation10], %s307
        %v310 = vld [vmem:[%s260] sm:$0xff]
        %v311 = vpack.c.bf16 %v310, %v310
        %v312 = vld [vmem:[%s269] sm:$0xff]
        %v313 = vld [vmem:[%s269 + $0x8] sm:$0xff]
        %v314 = vpack.c.bf16 %v313, %v312
        %v315 = vld [vmem:[#allocation7] sm:$0xff]
        %v316 = vld [vmem:[#allocation7 + $0x8] sm:$0xff]
        %v317 = vld [vmem:[#allocation7 + $0x10] sm:$0xff]
        %v318 = vld [vmem:[#allocation7 + $0x18] sm:$0xff]
        %v319 = vld [vmem:[#allocation7 + $0x20] sm:$0xff]
        %v320 = vld [vmem:[#allocation7 + $0x28] sm:$0xff]
        %v321 = vld [vmem:[#allocation7 + $0x30] sm:$0xff]
        %v322 = vld [vmem:[#allocation7 + $0x38] sm:$0xff]
        %v323 = vld [vmem:[#allocation7 + $0x40] sm:$0xff]
        %v324 = vld [vmem:[#allocation7 + $0x48] sm:$0xff]
        %v325 = vld [vmem:[#allocation7 + $0x50] sm:$0xff]
        %v326 = vld [vmem:[#allocation7 + $0x58] sm:$0xff]
        %v327 = vld [vmem:[#allocation7 + $0x60] sm:$0xff]
        %v328 = vld [vmem:[#allocation7 + $0x68] sm:$0xff]
        %v329 = vld [vmem:[#allocation7 + $0x70] sm:$0xff]
        %v330 = vld [vmem:[#allocation7 + $0x78] sm:$0xff]
        %v331 = vld [vmem:[#allocation7 + $0x80] sm:$0xff]
        %v332 = vld [vmem:[#allocation7 + $0x88] sm:$0xff]
        %v333 = vld [vmem:[#allocation7 + $0x90] sm:$0xff]
        %v334 = vld [vmem:[#allocation7 + $0x98] sm:$0xff]
        %v335 = vld [vmem:[#allocation7 + $0xa0] sm:$0xff]
        %v336 = vld [vmem:[#allocation7 + $0xa8] sm:$0xff]
        %v337 = vld [vmem:[#allocation7 + $0xb0] sm:$0xff]
        %v338 = vld [vmem:[#allocation7 + $0xb8] sm:$0xff]
        %v339 = vld [vmem:[#allocation7 + $0xc0] sm:$0xff]
        %v340 = vld [vmem:[#allocation7 + $0xc8] sm:$0xff]
        %v341 = vld [vmem:[#allocation7 + $0xd0] sm:$0xff]
        %v342 = vld [vmem:[#allocation7 + $0xd8] sm:$0xff]
        %v343 = vld [vmem:[#allocation7 + $0xe0] sm:$0xff]
        %v344 = vld [vmem:[#allocation7 + $0xe8] sm:$0xff]
        %v345 = vld [vmem:[#allocation7 + $0xf0] sm:$0xff]
        %v346 = vld [vmem:[#allocation7 + $0xf8] sm:$0xff]
        %v347 = vld [vmem:[#allocation8] sm:$0xff]
        %v348 = vld [vmem:[#allocation8 + $0x8] sm:$0xff]
        %v349 = vld [vmem:[#allocation8 + $0x10] sm:$0xff]
        %v350 = vld [vmem:[#allocation8 + $0x18] sm:$0xff]
        %v351 = vld [vmem:[#allocation8 + $0x20] sm:$0xff]
        %v352 = vld [vmem:[#allocation8 + $0x28] sm:$0xff]
        %v353 = vld [vmem:[#allocation8 + $0x30] sm:$0xff]
        %v354 = vld [vmem:[#allocation8 + $0x38] sm:$0xff]
        %v355 = vld [vmem:[#allocation8 + $0x40] sm:$0xff]
        %v356 = vld [vmem:[#allocation8 + $0x48] sm:$0xff]
        %v357 = vld [vmem:[#allocation8 + $0x50] sm:$0xff]
        %v358 = vld [vmem:[#allocation8 + $0x58] sm:$0xff]
        %v359 = vld [vmem:[#allocation8 + $0x60] sm:$0xff]
        %v360 = vld [vmem:[#allocation8 + $0x68] sm:$0xff]
        %v361 = vld [vmem:[#allocation8 + $0x70] sm:$0xff]
        %v362 = vld [vmem:[#allocation8 + $0x78] sm:$0xff]
        %v363 = vld [vmem:[#allocation8 + $0x80] sm:$0xff]
        %v364 = vld [vmem:[#allocation8 + $0x88] sm:$0xff]
        %v365 = vld [vmem:[#allocation8 + $0x90] sm:$0xff]
        %v366 = vld [vmem:[#allocation8 + $0x98] sm:$0xff]
        %v367 = vld [vmem:[#allocation8 + $0xa0] sm:$0xff]
        %v368 = vld [vmem:[#allocation8 + $0xa8] sm:$0xff]
        %v369 = vld [vmem:[#allocation8 + $0xb0] sm:$0xff]
        %v370 = vld [vmem:[#allocation8 + $0xb8] sm:$0xff]
        %v371 = vld [vmem:[#allocation8 + $0xc0] sm:$0xff]
        %v372 = vld [vmem:[#allocation8 + $0xc8] sm:$0xff]
        %v373 = vld [vmem:[#allocation8 + $0xd0] sm:$0xff]
        %v374 = vld [vmem:[#allocation8 + $0xd8] sm:$0xff]
        %v375 = vld [vmem:[#allocation8 + $0xe0] sm:$0xff]
        %v376 = vld [vmem:[#allocation8 + $0xe8] sm:$0xff]
        %v377 = vld [vmem:[#allocation8 + $0xf0] sm:$0xff]
        %v378 = vld [vmem:[#allocation8 + $0xf8] sm:$0xff]
        %v379 = vld [vmem:[%s4] sm:$0xf]
        %v381 = vlaneseq
        %v382 = vshrl.u32 %v381, 7
        %v383 = vsub.s32 0, %v382
        %v384 = vrot.slane %v379, %v383
        %v385 = vlaneseq
        %v386 = vshrl.u32 %v385, 7
        %v387 = vsub.s32 1, %v386
        %v388 = vrot.slane %v379, %v387
        %v389 = vlaneseq
        %v390 = vshrl.u32 %v389, 7
        %v391 = vsub.s32 2, %v390
        %v392 = vrot.slane %v379, %v391
        %v393 = vlaneseq
        %v394 = vshrl.u32 %v393, 7
        %v395 = vsub.s32 3, %v394
        %v396 = vrot.slane %v379, %v395
        %v433 = vunpack.c.l.b16 %v315
        %v434 = vunpack.c.h.b16 %v315
        %v435 = vunpack.c.l.b16 %v316
        %v436 = vunpack.c.h.b16 %v316
        %v437 = vunpack.c.l.b16 %v317
        %v438 = vunpack.c.h.b16 %v317
        %v439 = vunpack.c.l.b16 %v318
        %v440 = vunpack.c.h.b16 %v318
        %v441 = vunpack.c.l.b16 %v319
        %v442 = vunpack.c.h.b16 %v319
        %v443 = vunpack.c.l.b16 %v320
        %v444 = vunpack.c.h.b16 %v320
        %v445 = vunpack.c.l.b16 %v321
        %v446 = vunpack.c.h.b16 %v321
        %v447 = vunpack.c.l.b16 %v322
        %v448 = vunpack.c.h.b16 %v322
        %v449 = vunpack.c.l.b16 %v323
        %v450 = vunpack.c.h.b16 %v323
        %v451 = vunpack.c.l.b16 %v324
        %v452 = vunpack.c.h.b16 %v324
        %v453 = vunpack.c.l.b16 %v325
        %v454 = vunpack.c.h.b16 %v325
        %v455 = vunpack.c.l.b16 %v326
        %v456 = vunpack.c.h.b16 %v326
        %v457 = vunpack.c.l.b16 %v327
        %v458 = vunpack.c.h.b16 %v327
        %v459 = vunpack.c.l.b16 %v328
        %v460 = vunpack.c.h.b16 %v328
        %v461 = vunpack.c.l.b16 %v329
        %v462 = vunpack.c.h.b16 %v329
        %v463 = vunpack.c.l.b16 %v330
        %v464 = vunpack.c.h.b16 %v330
        %v465 = vunpack.c.l.b16 %v331
        %v466 = vunpack.c.h.b16 %v331
        %v467 = vunpack.c.l.b16 %v332
        %v468 = vunpack.c.h.b16 %v332
        %v469 = vunpack.c.l.b16 %v333
        %v470 = vunpack.c.h.b16 %v333
        %v471 = vunpack.c.l.b16 %v334
        %v472 = vunpack.c.h.b16 %v334
        %v473 = vunpack.c.l.b16 %v335
        %v474 = vunpack.c.h.b16 %v335
        %v475 = vunpack.c.l.b16 %v336
        %v476 = vunpack.c.h.b16 %v336
        %v477 = vunpack.c.l.b16 %v337
        %v478 = vunpack.c.h.b16 %v337
        %v479 = vunpack.c.l.b16 %v338
        %v480 = vunpack.c.h.b16 %v338
        %v481 = vunpack.c.l.b16 %v339
        %v482 = vunpack.c.h.b16 %v339
        %v483 = vunpack.c.l.b16 %v340
        %v484 = vunpack.c.h.b16 %v340
        %v485 = vunpack.c.l.b16 %v341
        %v486 = vunpack.c.h.b16 %v341
        %v487 = vunpack.c.l.b16 %v342
        %v488 = vunpack.c.h.b16 %v342
        %v489 = vunpack.c.l.b16 %v343
        %v490 = vunpack.c.h.b16 %v343
        %v491 = vunpack.c.l.b16 %v344
        %v492 = vunpack.c.h.b16 %v344
        %v493 = vunpack.c.l.b16 %v345
        %v494 = vunpack.c.h.b16 %v345
        %v495 = vunpack.c.l.b16 %v346
        %v496 = vunpack.c.h.b16 %v346
        %v497 = vpack.c.b16 %v437, %v433
        %v498 = vpack.c.b16 %v438, %v434
        %v499 = vpack.c.b16 %v439, %v435
        %v500 = vpack.c.b16 %v440, %v436
        %v501 = vpack.c.b16 %v445, %v441
        %v502 = vpack.c.b16 %v446, %v442
        %v503 = vpack.c.b16 %v447, %v443
        %v504 = vpack.c.b16 %v448, %v444
        %v505 = vpack.c.b16 %v453, %v449
        %v506 = vpack.c.b16 %v454, %v450
        %v507 = vpack.c.b16 %v455, %v451
        %v508 = vpack.c.b16 %v456, %v452
        %v509 = vpack.c.b16 %v461, %v457
        %v510 = vpack.c.b16 %v462, %v458
        %v511 = vpack.c.b16 %v463, %v459
        %v512 = vpack.c.b16 %v464, %v460
        %v513 = vpack.c.b16 %v469, %v465
        %v514 = vpack.c.b16 %v470, %v466
        %v515 = vpack.c.b16 %v471, %v467
        %v516 = vpack.c.b16 %v472, %v468
        %v517 = vpack.c.b16 %v477, %v473
        %v518 = vpack.c.b16 %v478, %v474
        %v519 = vpack.c.b16 %v479, %v475
        %v520 = vpack.c.b16 %v480, %v476
        %v521 = vpack.c.b16 %v485, %v481
        %v522 = vpack.c.b16 %v486, %v482
        %v523 = vpack.c.b16 %v487, %v483
        %v524 = vpack.c.b16 %v488, %v484
        %v525 = vpack.c.b16 %v493, %v489
        %v526 = vpack.c.b16 %v494, %v490
        %v527 = vpack.c.b16 %v495, %v491
        %v528 = vpack.c.b16 %v496, %v492
        %561 = vmatprep.subr.bf16.mxu0 %v498
        %562 = vmatpush1.bf16.msra.mxu0 %v497
        %563 = vmatprep.subr.bf16.mxu0 %v502
        %564 = vmatpush1.bf16.msra.mxu0 %v501
        %565 = vmatprep.subr.bf16.mxu0 %v506
        %566 = vmatpush1.bf16.msra.mxu0 %v505
        %567 = vmatprep.subr.bf16.mxu0 %v510
        %568 = vmatpush1.bf16.msra.mxu0 %v509
        %569 = vmatprep.subr.bf16.mxu0 %v514
        %570 = vmatpush1.bf16.msra.mxu0 %v513
        %571 = vmatprep.subr.bf16.mxu0 %v518
        %572 = vmatpush1.bf16.msra.mxu0 %v517
        %573 = vmatprep.subr.bf16.mxu0 %v522
        %574 = vmatpush1.bf16.msra.mxu0 %v521
        %575 = vmatprep.subr.bf16.mxu0 %v526
        %576 = vmatpush1.bf16.msra.mxu0 %v525
        %577 = vmatprep.subr.bf16.mxu0 0
        %578 = vmatpush1.bf16.msra.mxu0 0
        %579 = vmatprep.subr.bf16.mxu0 0
        %580 = vmatpush1.bf16.msra.mxu0 0
        %581 = vmatprep.subr.bf16.mxu0 0
        %582 = vmatpush1.bf16.msra.mxu0 0
        %583 = vmatprep.subr.bf16.mxu0 0
        %584 = vmatpush1.bf16.msra.mxu0 0
        %585 = vmatprep.subr.bf16.mxu0 0
        %586 = vmatpush1.bf16.msra.mxu0 0
        %587 = vmatprep.subr.bf16.mxu0 0
        %588 = vmatpush1.bf16.msra.mxu0 0
        %589 = vmatprep.subr.bf16.mxu0 0
        %590 = vmatpush1.bf16.msra.mxu0 0
        %591 = vmatprep.subr.bf16.mxu0 0
        %592 = vmatpush1.bf16.msra.mxu0 0
        %593 = vmatprep.mubr.bf16.mxu0 0
        %594 = vmatmul.mubr.bf16.gmra.mrb[0].mxu0 %v311
        %v595 = vpop.f32.mrb[0].mxu0
        %v596 = vadd.f32 %v384, %v595
        %v597 = vpop.f32.mrb[0].mxu0
        %v598 = vadd.f32 %v388, %v597
        %v599 = vpop.f32.mrb[0].mxu0
        %v600 = vpop.f32.mrb[0].mxu0
        %601 = vdwg.mxu0
        %602 = vmatprep.subr.bf16.mxu0 %v500
        %603 = vmatpush1.bf16.msra.mxu0 %v499
        %604 = vmatprep.subr.bf16.mxu0 %v504
        %605 = vmatpush1.bf16.msra.mxu0 %v503
        %606 = vmatprep.subr.bf16.mxu0 %v508
        %607 = vmatpush1.bf16.msra.mxu0 %v507
        %608 = vmatprep.subr.bf16.mxu0 %v512
        %609 = vmatpush1.bf16.msra.mxu0 %v511
        %610 = vmatprep.subr.bf16.mxu0 %v516
        %611 = vmatpush1.bf16.msra.mxu0 %v515
        %612 = vmatprep.subr.bf16.mxu0 %v520
        %613 = vmatpush1.bf16.msra.mxu0 %v519
        %614 = vmatprep.subr.bf16.mxu0 %v524
        %615 = vmatpush1.bf16.msra.mxu0 %v523
        %616 = vmatprep.subr.bf16.mxu0 %v528
        %617 = vmatpush1.bf16.msra.mxu0 %v527
        %618 = vmatprep.subr.bf16.mxu0 0
        %619 = vmatpush1.bf16.msra.mxu0 0
        %620 = vmatprep.subr.bf16.mxu0 0
        %621 = vmatpush1.bf16.msra.mxu0 0
        %622 = vmatprep.subr.bf16.mxu0 0
        %623 = vmatpush1.bf16.msra.mxu0 0
        %624 = vmatprep.subr.bf16.mxu0 0
        %625 = vmatpush1.bf16.msra.mxu0 0
        %626 = vmatprep.subr.bf16.mxu0 0
        %627 = vmatpush1.bf16.msra.mxu0 0
        %628 = vmatprep.subr.bf16.mxu0 0
        %629 = vmatpush1.bf16.msra.mxu0 0
        %630 = vmatprep.subr.bf16.mxu0 0
        %631 = vmatpush1.bf16.msra.mxu0 0
        %632 = vmatprep.subr.bf16.mxu0 0
        %633 = vmatpush1.bf16.msra.mxu0 0
        %634 = vmatprep.mubr.bf16.mxu0 0
        %635 = vmatmul.mubr.bf16.gmra.mrb[0].mxu0 %v311
        %v636 = vpop.f32.mrb[0].mxu0
        %v637 = vadd.f32 %v392, %v636
        %v638 = vpop.f32.mrb[0].mxu0
        %v639 = vadd.f32 %v396, %v638
        %v640 = vpop.f32.mrb[0].mxu0
        %v641 = vpop.f32.mrb[0].mxu0
        %642 = vdwg.mxu0
        %v643 = vadd.f32 %v310, 0.0
        %v644 = vpack.c.bf16 %v643, %v643
        %645 = vmatprep.subr.bf16.mxu0 0
        %646 = vmatpush1.bf16.xpose.msra.mxu0 %v314
        %647 = vmatprep.subr.bf16.mxu0 0
        %648 = vmatpush1.bf16.xpose.msra.mxu0 0
        %649 = vmatprep.subr.bf16.mxu0 0
        %650 = vmatpush1.bf16.xpose.msra.mxu0 0
        %651 = vmatprep.subr.bf16.mxu0 0
        %652 = vmatpush1.bf16.xpose.msra.mxu0 0
        %653 = vmatprep.subr.bf16.mxu0 0
        %654 = vmatpush1.bf16.xpose.msra.mxu0 0
        %655 = vmatprep.subr.bf16.mxu0 0
        %656 = vmatpush1.bf16.xpose.msra.mxu0 0
        %657 = vmatprep.subr.bf16.mxu0 0
        %658 = vmatpush1.bf16.xpose.msra.mxu0 0
        %659 = vmatprep.subr.bf16.mxu0 0
        %660 = vmatpush1.bf16.xpose.msra.mxu0 0
        %661 = vmatprep.subr.bf16.mxu0 0
        %662 = vmatpush1.bf16.xpose.msra.mxu0 0
        %663 = vmatprep.subr.bf16.mxu0 0
        %664 = vmatpush1.bf16.xpose.msra.mxu0 0
        %665 = vmatprep.subr.bf16.mxu0 0
        %666 = vmatpush1.bf16.xpose.msra.mxu0 0
        %667 = vmatprep.subr.bf16.mxu0 0
        %668 = vmatpush1.bf16.xpose.msra.mxu0 0
        %669 = vmatprep.subr.bf16.mxu0 0
        %670 = vmatpush1.bf16.xpose.msra.mxu0 0
        %671 = vmatprep.subr.bf16.mxu0 0
        %672 = vmatpush1.bf16.xpose.msra.mxu0 0
        %673 = vmatprep.subr.bf16.mxu0 0
        %674 = vmatpush1.bf16.xpose.msra.mxu0 0
        %675 = vmatprep.subr.bf16.mxu0 0
        %676 = vmatpush1.bf16.xpose.msra.mxu0 0
        %677 = vmatprep.mubr.bf16.mxu0 0
        %678 = vmatmul.mubr.bf16.gmra.mrb[0].mxu0 %v644
        %v679 = vpop.f32.mrb[0].mxu0
        %v680 = vadd.f32 0.0, %v679
        %v681 = vpop.f32.mrb[0].mxu0
        %v682 = vpop.f32.mrb[0].mxu0
        %v683 = vpop.f32.mrb[0].mxu0
        %684 = vdwg.mxu0
        %vm685 = vcmask 130048
        %v686 = vsel %vm685, %v680, -inf
        %687 = vmax.xlane.f32.xlu0 %v686
        %v688 = vpop.xlane.xlu0 %687
        %v689 = vsub.f32 %v680, %v688
        %v690 = vmul.f32 %v689, 1.442695
        %v691 = vpow.pop %v690
        %v692 = vsel %vm685, %v691, 0.0
        %693 = vadd.xlane.f32.xlu0 %v692
        %v694 = vpop.xlane.xlu0 %693
        %v695 = vrcp.pop %v694
        %v696 = vmul.f32 %v691, %v695
        %v697 = vpack.c.bf16 %v696, %v696
        %v699 = vsel %vm685, %v697, 0
        %701 = vmatprep.subr.bf16.mxu0 0
        %702 = vmatpush1.bf16.msra.mxu0 %v314
        %703 = vmatprep.subr.bf16.mxu0 0
        %704 = vmatpush1.bf16.msra.mxu0 0
        %705 = vmatprep.subr.bf16.mxu0 0
        %706 = vmatpush1.bf16.msra.mxu0 0
        %707 = vmatprep.subr.bf16.mxu0 0
        %708 = vmatpush1.bf16.msra.mxu0 0
        %709 = vmatprep.subr.bf16.mxu0 0
        %710 = vmatpush1.bf16.msra.mxu0 0
        %711 = vmatprep.subr.bf16.mxu0 0
        %712 = vmatpush1.bf16.msra.mxu0 0
        %713 = vmatprep.subr.bf16.mxu0 0
        %714 = vmatpush1.bf16.msra.mxu0 0
        %715 = vmatprep.subr.bf16.mxu0 0
        %716 = vmatpush1.bf16.msra.mxu0 0
        %717 = vmatprep.subr.bf16.mxu0 0
        %718 = vmatpush1.bf16.msra.mxu0 0
        %719 = vmatprep.subr.bf16.mxu0 0
        %720 = vmatpush1.bf16.msra.mxu0 0
        %721 = vmatprep.subr.bf16.mxu0 0
        %722 = vmatpush1.bf16.msra.mxu0 0
        %723 = vmatprep.subr.bf16.mxu0 0
        %724 = vmatpush1.bf16.msra.mxu0 0
        %725 = vmatprep.subr.bf16.mxu0 0
        %726 = vmatpush1.bf16.msra.mxu0 0
        %727 = vmatprep.subr.bf16.mxu0 0
        %728 = vmatpush1.bf16.msra.mxu0 0
        %729 = vmatprep.subr.bf16.mxu0 0
        %730 = vmatpush1.bf16.msra.mxu0 0
        %731 = vmatprep.subr.bf16.mxu0 0
        %732 = vmatpush1.bf16.msra.mxu0 0
        %733 = vmatprep.mubr.bf16.mxu0 0
        %734 = vmatmul.mubr.bf16.gmra.mrb[0].mxu0 %v699
        %v735 = vpop.f32.mrb[0].mxu0
        %v736 = vadd.f32 0.0, %v735
        %v737 = vpop.f32.mrb[0].mxu0
        %v738 = vpop.f32.mrb[0].mxu0
        %v739 = vpop.f32.mrb[0].mxu0
        %740 = vdwg.mxu0
        %v741 = vadd.f32 %v643, %v736
        %v742 = vpack.c.bf16 %v741, %v741
        %v775 = vunpack.c.l.b16 %v347
        %v776 = vunpack.c.h.b16 %v347
        %v777 = vunpack.c.l.b16 %v348
        %v778 = vunpack.c.h.b16 %v348
        %v779 = vunpack.c.l.b16 %v349
        %v780 = vunpack.c.h.b16 %v349
        %v781 = vunpack.c.l.b16 %v350
        %v782 = vunpack.c.h.b16 %v350
        %v783 = vunpack.c.l.b16 %v351
        %v784 = vunpack.c.h.b16 %v351
        %v785 = vunpack.c.l.b16 %v352
        %v786 = vunpack.c.h.b16 %v352
        %v787 = vunpack.c.l.b16 %v353
        %v788 = vunpack.c.h.b16 %v353
        %v789 = vunpack.c.l.b16 %v354
        %v790 = vunpack.c.h.b16 %v354
        %v791 = vunpack.c.l.b16 %v355
        %v792 = vunpack.c.h.b16 %v355
        %v793 = vunpack.c.l.b16 %v356
        %v794 = vunpack.c.h.b16 %v356
        %v795 = vunpack.c.l.b16 %v357
        %v796 = vunpack.c.h.b16 %v357
        %v797 = vunpack.c.l.b16 %v358
        %v798 = vunpack.c.h.b16 %v358
        %v799 = vunpack.c.l.b16 %v359
        %v800 = vunpack.c.h.b16 %v359
        %v801 = vunpack.c.l.b16 %v360
        %v802 = vunpack.c.h.b16 %v360
        %v803 = vunpack.c.l.b16 %v361
        %v804 = vunpack.c.h.b16 %v361
        %v805 = vunpack.c.l.b16 %v362
        %v806 = vunpack.c.h.b16 %v362
        %v807 = vunpack.c.l.b16 %v363
        %v808 = vunpack.c.h.b16 %v363
        %v809 = vunpack.c.l.b16 %v364
        %v810 = vunpack.c.h.b16 %v364
        %v811 = vunpack.c.l.b16 %v365
        %v812 = vunpack.c.h.b16 %v365
        %v813 = vunpack.c.l.b16 %v366
        %v814 = vunpack.c.h.b16 %v366
        %v815 = vunpack.c.l.b16 %v367
        %v816 = vunpack.c.h.b16 %v367
        %v817 = vunpack.c.l.b16 %v368
        %v818 = vunpack.c.h.b16 %v368
        %v819 = vunpack.c.l.b16 %v369
        %v820 = vunpack.c.h.b16 %v369
        %v821 = vunpack.c.l.b16 %v370
        %v822 = vunpack.c.h.b16 %v370
        %v823 = vunpack.c.l.b16 %v371
        %v824 = vunpack.c.h.b16 %v371
        %v825 = vunpack.c.l.b16 %v372
        %v826 = vunpack.c.h.b16 %v372
        %v827 = vunpack.c.l.b16 %v373
        %v828 = vunpack.c.h.b16 %v373
        %v829 = vunpack.c.l.b16 %v374
        %v830 = vunpack.c.h.b16 %v374
        %v831 = vunpack.c.l.b16 %v375
        %v832 = vunpack.c.h.b16 %v375
        %v833 = vunpack.c.l.b16 %v376
        %v834 = vunpack.c.h.b16 %v376
        %v835 = vunpack.c.l.b16 %v377
        %v836 = vunpack.c.h.b16 %v377
        %v837 = vunpack.c.l.b16 %v378
        %v838 = vunpack.c.h.b16 %v378
        %v839 = vpack.c.b16 %v779, %v775
        %v840 = vpack.c.b16 %v780, %v776
        %v841 = vpack.c.b16 %v781, %v777
        %v842 = vpack.c.b16 %v782, %v778
        %v843 = vpack.c.b16 %v787, %v783
        %v844 = vpack.c.b16 %v788, %v784
        %v845 = vpack.c.b16 %v789, %v785
        %v846 = vpack.c.b16 %v790, %v786
        %v847 = vpack.c.b16 %v795, %v791
        %v848 = vpack.c.b16 %v796, %v792
        %v849 = vpack.c.b16 %v797, %v793
        %v850 = vpack.c.b16 %v798, %v794
        %v851 = vpack.c.b16 %v803, %v799
        %v852 = vpack.c.b16 %v804, %v800
        %v853 = vpack.c.b16 %v805, %v801
        %v854 = vpack.c.b16 %v806, %v802
        %v855 = vpack.c.b16 %v811, %v807
        %v856 = vpack.c.b16 %v812, %v808
        %v857 = vpack.c.b16 %v813, %v809
        %v858 = vpack.c.b16 %v814, %v810
        %v859 = vpack.c.b16 %v819, %v815
        %v860 = vpack.c.b16 %v820, %v816
        %v861 = vpack.c.b16 %v821, %v817
        %v862 = vpack.c.b16 %v822, %v818
        %v863 = vpack.c.b16 %v827, %v823
        %v864 = vpack.c.b16 %v828, %v824
        %v865 = vpack.c.b16 %v829, %v825
        %v866 = vpack.c.b16 %v830, %v826
        %v867 = vpack.c.b16 %v835, %v831
        %v868 = vpack.c.b16 %v836, %v832
        %v869 = vpack.c.b16 %v837, %v833
        %v870 = vpack.c.b16 %v838, %v834
        %903 = vmatprep.subr.bf16.mxu0 %v840
        %904 = vmatpush1.bf16.msra.mxu0 %v839
        %905 = vmatprep.subr.bf16.mxu0 %v844
        %906 = vmatpush1.bf16.msra.mxu0 %v843
        %907 = vmatprep.subr.bf16.mxu0 %v848
        %908 = vmatpush1.bf16.msra.mxu0 %v847
        %909 = vmatprep.subr.bf16.mxu0 %v852
        %910 = vmatpush1.bf16.msra.mxu0 %v851
        %911 = vmatprep.subr.bf16.mxu0 %v856
        %912 = vmatpush1.bf16.msra.mxu0 %v855
        %913 = vmatprep.subr.bf16.mxu0 %v860
        %914 = vmatpush1.bf16.msra.mxu0 %v859
        %915 = vmatprep.subr.bf16.mxu0 %v864
        %916 = vmatpush1.bf16.msra.mxu0 %v863
        %917 = vmatprep.subr.bf16.mxu0 %v868
        %918 = vmatpush1.bf16.msra.mxu0 %v867
        %919 = vmatprep.subr.bf16.mxu0 0
        %920 = vmatpush1.bf16.msra.mxu0 0
        %921 = vmatprep.subr.bf16.mxu0 0
        %922 = vmatpush1.bf16.msra.mxu0 0
        %923 = vmatprep.subr.bf16.mxu0 0
        %924 = vmatpush1.bf16.msra.mxu0 0
        %925 = vmatprep.subr.bf16.mxu0 0
        %926 = vmatpush1.bf16.msra.mxu0 0
        %927 = vmatprep.subr.bf16.mxu0 0
        %928 = vmatpush1.bf16.msra.mxu0 0
        %929 = vmatprep.subr.bf16.mxu0 0
        %930 = vmatpush1.bf16.msra.mxu0 0
        %931 = vmatprep.subr.bf16.mxu0 0
        %932 = vmatpush1.bf16.msra.mxu0 0
        %933 = vmatprep.subr.bf16.mxu0 0
        %934 = vmatpush1.bf16.msra.mxu0 0
        %935 = vmatprep.mubr.bf16.mxu0 0
        %936 = vmatmul.mubr.bf16.gmra.mrb[0].mxu0 %v742
        %v937 = vpop.f32.mrb[0].mxu0
        %v938 = vadd.f32 0.0, %v937
        %v939 = vpop.f32.mrb[0].mxu0
        %v940 = vadd.f32 0.0, %v939
        %v941 = vpop.f32.mrb[0].mxu0
        %v942 = vpop.f32.mrb[0].mxu0
        %943 = vdwg.mxu0
        %944 = vmatprep.subr.bf16.mxu0 %v842
        %945 = vmatpush1.bf16.msra.mxu0 %v841
        %946 = vmatprep.subr.bf16.mxu0 %v846
        %947 = vmatpush1.bf16.msra.mxu0 %v845
        %948 = vmatprep.subr.bf16.mxu0 %v850
        %949 = vmatpush1.bf16.msra.mxu0 %v849
        %950 = vmatprep.subr.bf16.mxu0 %v854
        %951 = vmatpush1.bf16.msra.mxu0 %v853
        %952 = vmatprep.subr.bf16.mxu0 %v858
        %953 = vmatpush1.bf16.msra.mxu0 %v857
        %954 = vmatprep.subr.bf16.mxu0 %v862
        %955 = vmatpush1.bf16.msra.mxu0 %v861
        %956 = vmatprep.subr.bf16.mxu0 %v866
        %957 = vmatpush1.bf16.msra.mxu0 %v865
        %958 = vmatprep.subr.bf16.mxu0 %v870
        %959 = vmatpush1.bf16.msra.mxu0 %v869
        %960 = vmatprep.subr.bf16.mxu0 0
        %961 = vmatpush1.bf16.msra.mxu0 0
        %962 = vmatprep.subr.bf16.mxu0 0
        %963 = vmatpush1.bf16.msra.mxu0 0
        %964 = vmatprep.subr.bf16.mxu0 0
        %965 = vmatpush1.bf16.msra.mxu0 0
        %966 = vmatprep.subr.bf16.mxu0 0
        %967 = vmatpush1.bf16.msra.mxu0 0
        %968 = vmatprep.subr.bf16.mxu0 0
        %969 = vmatpush1.bf16.msra.mxu0 0
        %970 = vmatprep.subr.bf16.mxu0 0
        %971 = vmatpush1.bf16.msra.mxu0 0
        %972 = vmatprep.subr.bf16.mxu0 0
        %973 = vmatpush1.bf16.msra.mxu0 0
        %974 = vmatprep.subr.bf16.mxu0 0
        %975 = vmatpush1.bf16.msra.mxu0 0
        %976 = vmatprep.mubr.bf16.mxu0 0
        %977 = vmatmul.mubr.bf16.gmra.mrb[0].mxu0 %v742
        %v978 = vpop.f32.mrb[0].mxu0
        %v979 = vadd.f32 0.0, %v978
        %v980 = vpop.f32.mrb[0].mxu0
        %v981 = vadd.f32 0.0, %v980
        %v982 = vpop.f32.mrb[0].mxu0
        %v983 = vpop.f32.mrb[0].mxu0
        %984 = vdwg.mxu0
        %v985 = vadd.f32 %v596, %v938
        %v986 = vadd.f32 %v598, %v940
        %v987 = vadd.f32 %v637, %v979
        %v988 = vadd.f32 %v639, %v981
        %v989 = vxor.u32 %v985, 2147483648
        %v990 = vmul.f32 %v989, 1.442695
        %v991 = vpow.pop %v990
        %v992 = vadd.f32 %v991, 1.0
        %v993 = vrcp.pop %v992
        %v994 = vmul.f32 1.0, %v993
        %v995 = vxor.u32 %v986, 2147483648
        %v996 = vmul.f32 %v995, 1.442695
        %v997 = vpow.pop %v996
        %v998 = vadd.f32 %v997, 1.0
        %v999 = vrcp.pop %v998
        %v1000 = vmul.f32 1.0, %v999
        %v1001 = vtanh.pop %v987
        %v1002 = vxor.u32 %v988, 2147483648
        %v1003 = vmul.f32 %v1002, 1.442695
        %v1004 = vpow.pop %v1003
        %v1005 = vadd.f32 %v1004, 1.0
        %v1006 = vrcp.pop %v1005
        %v1007 = vmul.f32 1.0, %v1006
        %v1008 = vmul.f32 %v1000, 0.0
        %v1009 = vmul.f32 %v994, %v1001
        %v1010 = vadd.f32 %v1008, %v1009
        %v1011 = vtanh.pop %v1010
        %v1012 = vmul.f32 %v1007, %v1011
        %v1013 = vadd.f32 %v1012, %v310
        %v1014 = vpack.c.bf16 %v1013, %v1013
        %1015 = vmatprep.subr.bf16.mxu0 0
        %1016 = vmatpush1.bf16.xpose.msra.mxu0 %v314
        %1017 = vmatprep.subr.bf16.mxu0 0
        %1018 = vmatpush1.bf16.xpose.msra.mxu0 0
        %1019 = vmatprep.subr.bf16.mxu0 0
        %1020 = vmatpush1.bf16.xpose.msra.mxu0 0
        %1021 = vmatprep.subr.bf16.mxu0 0
        %1022 = vmatpush1.bf16.xpose.msra.mxu0 0
        %1023 = vmatprep.subr.bf16.mxu0 0
        %1024 = vmatpush1.bf16.xpose.msra.mxu0 0
        %1025 = vmatprep.subr.bf16.mxu0 0
        %1026 = vmatpush1.bf16.xpose.msra.mxu0 0
        %1027 = vmatprep.subr.bf16.mxu0 0
        %1028 = vmatpush1.bf16.xpose.msra.mxu0 0
        %1029 = vmatprep.subr.bf16.mxu0 0
        %1030 = vmatpush1.bf16.xpose.msra.mxu0 0
        %1031 = vmatprep.subr.bf16.mxu0 0
        %1032 = vmatpush1.bf16.xpose.msra.mxu0 0
        %1033 = vmatprep.subr.bf16.mxu0 0
        %1034 = vmatpush1.bf16.xpose.msra.mxu0 0
        %1035 = vmatprep.subr.bf16.mxu0 0
        %1036 = vmatpush1.bf16.xpose.msra.mxu0 0
        %1037 = vmatprep.subr.bf16.mxu0 0
        %1038 = vmatpush1.bf16.xpose.msra.mxu0 0
        %1039 = vmatprep.subr.bf16.mxu0 0
        %1040 = vmatpush1.bf16.xpose.msra.mxu0 0
        %1041 = vmatprep.subr.bf16.mxu0 0
        %1042 = vmatpush1.bf16.xpose.msra.mxu0 0
        %1043 = vmatprep.subr.bf16.mxu0 0
        %1044 = vmatpush1.bf16.xpose.msra.mxu0 0
        %1045 = vmatprep.subr.bf16.mxu0 0
        %1046 = vmatpush1.bf16.xpose.msra.mxu0 0
        %1047 = vmatprep.mubr.bf16.mxu0 0
        %1048 = vmatmul.mubr.bf16.gmra.mrb[0].mxu0 %v1014
        %v1049 = vpop.f32.mrb[0].mxu0
        %v1050 = vadd.f32 0.0, %v1049
        %v1051 = vpop.f32.mrb[0].mxu0
        %v1052 = vpop.f32.mrb[0].mxu0
        %v1053 = vpop.f32.mrb[0].mxu0
        %1054 = vdwg.mxu0
        %v1055 = vsel %vm685, %v1050, -inf
        %1056 = vmax.xlane.f32.xlu0 %v1055
        %v1057 = vpop.xlane.xlu0 %1056
        %v1058 = vsub.f32 %v1050, %v1057
        %v1059 = vmul.f32 %v1058, 1.442695
        %v1060 = vpow.pop %v1059
        %v1061 = vsel %vm685, %v1060, 0.0
        %1062 = vadd.xlane.f32.xlu0 %v1061
        %v1063 = vpop.xlane.xlu0 %1062
        %v1064 = vrcp.pop %v1063
        %v1065 = vmul.f32 %v1060, %v1064
        %v1066 = vpack.c.bf16 %v1065, %v1065
        %v1068 = vsel %vm685, %v1066, 0
        %1070 = vmatprep.subr.bf16.mxu0 0
        %1071 = vmatpush1.bf16.msra.mxu0 %v314
        %1072 = vmatprep.subr.bf16.mxu0 0
        %1073 = vmatpush1.bf16.msra.mxu0 0
        %1074 = vmatprep.subr.bf16.mxu0 0
        %1075 = vmatpush1.bf16.msra.mxu0 0
        %1076 = vmatprep.subr.bf16.mxu0 0
        %1077 = vmatpush1.bf16.msra.mxu0 0
        %1078 = vmatprep.subr.bf16.mxu0 0
        %1079 = vmatpush1.bf16.msra.mxu0 0
        %1080 = vmatprep.subr.bf16.mxu0 0
        %1081 = vmatpush1.bf16.msra.mxu0 0
        %1082 = vmatprep.subr.bf16.mxu0 0
        %1083 = vmatpush1.bf16.msra.mxu0 0
        %1084 = vmatprep.subr.bf16.mxu0 0
        %1085 = vmatpush1.bf16.msra.mxu0 0
        %1086 = vmatprep.subr.bf16.mxu0 0
        %1087 = vmatpush1.bf16.msra.mxu0 0
        %1088 = vmatprep.subr.bf16.mxu0 0
        %1089 = vmatpush1.bf16.msra.mxu0 0
        %1090 = vmatprep.subr.bf16.mxu0 0
        %1091 = vmatpush1.bf16.msra.mxu0 0
        %1092 = vmatprep.subr.bf16.mxu0 0
        %1093 = vmatpush1.bf16.msra.mxu0 0
        %1094 = vmatprep.subr.bf16.mxu0 0
        %1095 = vmatpush1.bf16.msra.mxu0 0
        %1096 = vmatprep.subr.bf16.mxu0 0
        %1097 = vmatpush1.bf16.msra.mxu0 0
        %1098 = vmatprep.subr.bf16.mxu0 0
        %1099 = vmatpush1.bf16.msra.mxu0 0
        %1100 = vmatprep.subr.bf16.mxu0 0
        %1101 = vmatpush1.bf16.msra.mxu0 0
        %1102 = vmatprep.mubr.bf16.mxu0 0
        %1103 = vmatmul.mubr.bf16.gmra.mrb[0].mxu0 %v1068
        %v1104 = vpop.f32.mrb[0].mxu0
        %v1105 = vadd.f32 0.0, %v1104
        %v1106 = vpop.f32.mrb[0].mxu0
        %v1107 = vpop.f32.mrb[0].mxu0
        %v1108 = vpop.f32.mrb[0].mxu0
        %1109 = vdwg.mxu0
        %v1110 = vadd.f32 %v1013, %v1105
        %v1111 = vpack.c.bf16 %v1110, %v1110
        %1112 = vmatprep.subr.bf16.mxu0 %v840
        %1113 = vmatpush1.bf16.msra.mxu0 %v839
        %1114 = vmatprep.subr.bf16.mxu0 %v844
        %1115 = vmatpush1.bf16.msra.mxu0 %v843
        %1116 = vmatprep.subr.bf16.mxu0 %v848
        %1117 = vmatpush1.bf16.msra.mxu0 %v847
        %1118 = vmatprep.subr.bf16.mxu0 %v852
        %1119 = vmatpush1.bf16.msra.mxu0 %v851
        %1120 = vmatprep.subr.bf16.mxu0 %v856
        %1121 = vmatpush1.bf16.msra.mxu0 %v855
        %1122 = vmatprep.subr.bf16.mxu0 %v860
        %1123 = vmatpush1.bf16.msra.mxu0 %v859
        %1124 = vmatprep.subr.bf16.mxu0 %v864
        %1125 = vmatpush1.bf16.msra.mxu0 %v863
        %1126 = vmatprep.subr.bf16.mxu0 %v868
        %1127 = vmatpush1.bf16.msra.mxu0 %v867
        %1128 = vmatprep.subr.bf16.mxu0 0
        %1129 = vmatpush1.bf16.msra.mxu0 0
        %1130 = vmatprep.subr.bf16.mxu0 0
        %1131 = vmatpush1.bf16.msra.mxu0 0
        %1132 = vmatprep.subr.bf16.mxu0 0
        %1133 = vmatpush1.bf16.msra.mxu0 0
        %1134 = vmatprep.subr.bf16.mxu0 0
        %1135 = vmatpush1.bf16.msra.mxu0 0
        %1136 = vmatprep.subr.bf16.mxu0 0
        %1137 = vmatpush1.bf16.msra.mxu0 0
        %1138 = vmatprep.subr.bf16.mxu0 0
        %1139 = vmatpush1.bf16.msra.mxu0 0
        %1140 = vmatprep.subr.bf16.mxu0 0
        %1141 = vmatpush1.bf16.msra.mxu0 0
        %1142 = vmatprep.subr.bf16.mxu0 0
        %1143 = vmatpush1.bf16.msra.mxu0 0
        %1144 = vmatprep.mubr.bf16.mxu0 0
        %1145 = vmatmul.mubr.bf16.gmra.mrb[0].mxu0 %v1111
        %v1146 = vpop.f32.mrb[0].mxu0
        %v1147 = vadd.f32 0.0, %v1146
        %v1148 = vpop.f32.mrb[0].mxu0
        %v1149 = vadd.f32 0.0, %v1148
        %v1150 = vpop.f32.mrb[0].mxu0
        %v1151 = vpop.f32.mrb[0].mxu0
        %1152 = vdwg.mxu0
        %1153 = vmatprep.subr.bf16.mxu0 %v842
        %1154 = vmatpush1.bf16.msra.mxu0 %v841
        %1155 = vmatprep.subr.bf16.mxu0 %v846
        %1156 = vmatpush1.bf16.msra.mxu0 %v845
        %1157 = vmatprep.subr.bf16.mxu0 %v850
        %1158 = vmatpush1.bf16.msra.mxu0 %v849
        %1159 = vmatprep.subr.bf16.mxu0 %v854
        %1160 = vmatpush1.bf16.msra.mxu0 %v853
        %1161 = vmatprep.subr.bf16.mxu0 %v858
        %1162 = vmatpush1.bf16.msra.mxu0 %v857
        %1163 = vmatprep.subr.bf16.mxu0 %v862
        %1164 = vmatpush1.bf16.msra.mxu0 %v861
        %1165 = vmatprep.subr.bf16.mxu0 %v866
        %1166 = vmatpush1.bf16.msra.mxu0 %v865
        %1167 = vmatprep.subr.bf16.mxu0 %v870
        %1168 = vmatpush1.bf16.msra.mxu0 %v869
        %1169 = vmatprep.subr.bf16.mxu0 0
        %1170 = vmatpush1.bf16.msra.mxu0 0
        %1171 = vmatprep.subr.bf16.mxu0 0
        %1172 = vmatpush1.bf16.msra.mxu0 0
        %1173 = vmatprep.subr.bf16.mxu0 0
        %1174 = vmatpush1.bf16.msra.mxu0 0
        %1175 = vmatprep.subr.bf16.mxu0 0
        %1176 = vmatpush1.bf16.msra.mxu0 0
        %1177 = vmatprep.subr.bf16.mxu0 0
        %1178 = vmatpush1.bf16.msra.mxu0 0
        %1179 = vmatprep.subr.bf16.mxu0 0
        %1180 = vmatpush1.bf16.msra.mxu0 0
        %1181 = vmatprep.subr.bf16.mxu0 0
        %1182 = vmatpush1.bf16.msra.mxu0 0
        %1183 = vmatprep.subr.bf16.mxu0 0
        %1184 = vmatpush1.bf16.msra.mxu0 0
        %1185 = vmatprep.mubr.bf16.mxu0 0
        %1186 = vmatmul.mubr.bf16.gmra.mrb[0].mxu0 %v1111
        %v1187 = vpop.f32.mrb[0].mxu0
        %v1188 = vadd.f32 0.0, %v1187
        %v1189 = vpop.f32.mrb[0].mxu0
        %v1190 = vadd.f32 0.0, %v1189
        %v1191 = vpop.f32.mrb[0].mxu0
        %v1192 = vpop.f32.mrb[0].mxu0
        %1193 = vdwg.mxu0
        %v1194 = vadd.f32 %v596, %v1147
        %v1195 = vadd.f32 %v598, %v1149
        %v1196 = vadd.f32 %v637, %v1188
        %v1197 = vadd.f32 %v639, %v1190
        %v1198 = vxor.u32 %v1194, 2147483648
        %v1199 = vmul.f32 %v1198, 1.442695
        %v1200 = vpow.pop %v1199
        %v1201 = vadd.f32 %v1200, 1.0
        %v1202 = vrcp.pop %v1201
        %v1203 = vmul.f32 1.0, %v1202
        %v1204 = vxor.u32 %v1195, 2147483648
        %v1205 = vmul.f32 %v1204, 1.442695
        %v1206 = vpow.pop %v1205
        %v1207 = vadd.f32 %v1206, 1.0
        %v1208 = vrcp.pop %v1207
        %v1209 = vmul.f32 1.0, %v1208
        %v1210 = vtanh.pop %v1196
        %v1211 = vxor.u32 %v1197, 2147483648
        %v1212 = vmul.f32 %v1211, 1.442695
        %v1213 = vpow.pop %v1212
        %v1214 = vadd.f32 %v1213, 1.0
        %v1215 = vrcp.pop %v1214
        %v1216 = vmul.f32 1.0, %v1215
        %v1217 = vmul.f32 %v1209, %v1010
        %v1218 = vmul.f32 %v1203, %v1210
        %v1219 = vadd.f32 %v1217, %v1218
        %v1220 = vtanh.pop %v1219
        %v1221 = vmul.f32 %v1216, %v1220
        %v1222 = vadd.f32 %v1221, %v310
        %v1223 = vpack.c.bf16 %v1222, %v1222
        %1224 = vmatprep.subr.bf16.mxu0 0
        %1225 = vmatpush1.bf16.xpose.msra.mxu0 %v314
        %1226 = vmatprep.subr.bf16.mxu0 0
        %1227 = vmatpush1.bf16.xpose.msra.mxu0 0
        %1228 = vmatprep.subr.bf16.mxu0 0
        %1229 = vmatpush1.bf16.xpose.msra.mxu0 0
        %1230 = vmatprep.subr.bf16.mxu0 0
        %1231 = vmatpush1.bf16.xpose.msra.mxu0 0
        %1232 = vmatprep.subr.bf16.mxu0 0
        %1233 = vmatpush1.bf16.xpose.msra.mxu0 0
        %1234 = vmatprep.subr.bf16.mxu0 0
        %1235 = vmatpush1.bf16.xpose.msra.mxu0 0
        %1236 = vmatprep.subr.bf16.mxu0 0
        %1237 = vmatpush1.bf16.xpose.msra.mxu0 0
        %1238 = vmatprep.subr.bf16.mxu0 0
        %1239 = vmatpush1.bf16.xpose.msra.mxu0 0
        %1240 = vmatprep.subr.bf16.mxu0 0
        %1241 = vmatpush1.bf16.xpose.msra.mxu0 0
        %1242 = vmatprep.subr.bf16.mxu0 0
        %1243 = vmatpush1.bf16.xpose.msra.mxu0 0
        %1244 = vmatprep.subr.bf16.mxu0 0
        %1245 = vmatpush1.bf16.xpose.msra.mxu0 0
        %1246 = vmatprep.subr.bf16.mxu0 0
        %1247 = vmatpush1.bf16.xpose.msra.mxu0 0
        %1248 = vmatprep.subr.bf16.mxu0 0
        %1249 = vmatpush1.bf16.xpose.msra.mxu0 0
        %1250 = vmatprep.subr.bf16.mxu0 0
        %1251 = vmatpush1.bf16.xpose.msra.mxu0 0
        %1252 = vmatprep.subr.bf16.mxu0 0
        %1253 = vmatpush1.bf16.xpose.msra.mxu0 0
        %1254 = vmatprep.subr.bf16.mxu0 0
        %1255 = vmatpush1.bf16.xpose.msra.mxu0 0
        %1256 = vmatprep.mubr.bf16.mxu0 0
        %1257 = vmatmul.mubr.bf16.gmra.mrb[0].mxu0 %v1223
        %v1258 = vpop.f32.mrb[0].mxu0
        %v1259 = vadd.f32 0.0, %v1258
        %v1260 = vpop.f32.mrb[0].mxu0
        %v1261 = vpop.f32.mrb[0].mxu0
        %v1262 = vpop.f32.mrb[0].mxu0
        %1263 = vdwg.mxu0
        %v1264 = vsel %vm685, %v1259, -inf
        %1265 = vmax.xlane.f32.xlu0 %v1264
        %v1266 = vpop.xlane.xlu0 %1265
        %v1267 = vsub.f32 %v1259, %v1266
        %v1268 = vmul.f32 %v1267, 1.442695
        %v1269 = vpow.pop %v1268
        %v1270 = vsel %vm685, %v1269, 0.0
        %1271 = vadd.xlane.f32.xlu0 %v1270
        %v1272 = vpop.xlane.xlu0 %1271
        %v1273 = vrcp.pop %v1272
        %v1274 = vmul.f32 %v1269, %v1273
        %v1275 = vpack.c.bf16 %v1274, %v1274
        %v1277 = vsel %vm685, %v1275, 0
        %1279 = vmatprep.subr.bf16.mxu0 0
        %1280 = vmatpush1.bf16.msra.mxu0 %v314
        %1281 = vmatprep.subr.bf16.mxu0 0
        %1282 = vmatpush1.bf16.msra.mxu0 0
        %1283 = vmatprep.subr.bf16.mxu0 0
        %1284 = vmatpush1.bf16.msra.mxu0 0
        %1285 = vmatprep.subr.bf16.mxu0 0
        %1286 = vmatpush1.bf16.msra.mxu0 0
        %1287 = vmatprep.subr.bf16.mxu0 0
        %1288 = vmatpush1.bf16.msra.mxu0 0
        %1289 = vmatprep.subr.bf16.mxu0 0
        %1290 = vmatpush1.bf16.msra.mxu0 0
        %1291 = vmatprep.subr.bf16.mxu0 0
        %1292 = vmatpush1.bf16.msra.mxu0 0
        %1293 = vmatprep.subr.bf16.mxu0 0
        %1294 = vmatpush1.bf16.msra.mxu0 0
        %1295 = vmatprep.subr.bf16.mxu0 0
        %1296 = vmatpush1.bf16.msra.mxu0 0
        %1297 = vmatprep.subr.bf16.mxu0 0
        %1298 = vmatpush1.bf16.msra.mxu0 0
        %1299 = vmatprep.subr.bf16.mxu0 0
        %1300 = vmatpush1.bf16.msra.mxu0 0
        %1301 = vmatprep.subr.bf16.mxu0 0
        %1302 = vmatpush1.bf16.msra.mxu0 0
        %1303 = vmatprep.subr.bf16.mxu0 0
        %1304 = vmatpush1.bf16.msra.mxu0 0
        %1305 = vmatprep.subr.bf16.mxu0 0
        %1306 = vmatpush1.bf16.msra.mxu0 0
        %1307 = vmatprep.subr.bf16.mxu0 0
        %1308 = vmatpush1.bf16.msra.mxu0 0
        %1309 = vmatprep.subr.bf16.mxu0 0
        %1310 = vmatpush1.bf16.msra.mxu0 0
        %1311 = vmatprep.mubr.bf16.mxu0 0
        %1312 = vmatmul.mubr.bf16.gmra.mrb[0].mxu0 %v1277
        %v1313 = vpop.f32.mrb[0].mxu0
        %v1314 = vadd.f32 0.0, %v1313
        %v1315 = vpop.f32.mrb[0].mxu0
        %v1316 = vpop.f32.mrb[0].mxu0
        %v1317 = vpop.f32.mrb[0].mxu0
        %1318 = vdwg.mxu0
        %v1319 = vadd.f32 %v1222, %v1314
        %v1320 = vpack.c.bf16 %v1319, %v1319
        %1321 = vmatprep.subr.bf16.mxu0 %v840
        %1322 = vmatpush1.bf16.msra.mxu0 %v839
        %1323 = vmatprep.subr.bf16.mxu0 %v844
        %1324 = vmatpush1.bf16.msra.mxu0 %v843
        %1325 = vmatprep.subr.bf16.mxu0 %v848
        %1326 = vmatpush1.bf16.msra.mxu0 %v847
        %1327 = vmatprep.subr.bf16.mxu0 %v852
        %1328 = vmatpush1.bf16.msra.mxu0 %v851
        %1329 = vmatprep.subr.bf16.mxu0 %v856
        %1330 = vmatpush1.bf16.msra.mxu0 %v855
        %1331 = vmatprep.subr.bf16.mxu0 %v860
        %1332 = vmatpush1.bf16.msra.mxu0 %v859
        %1333 = vmatprep.subr.bf16.mxu0 %v864
        %1334 = vmatpush1.bf16.msra.mxu0 %v863
        %1335 = vmatprep.subr.bf16.mxu0 %v868
        %1336 = vmatpush1.bf16.msra.mxu0 %v867
        %1337 = vmatprep.subr.bf16.mxu0 0
        %1338 = vmatpush1.bf16.msra.mxu0 0
        %1339 = vmatprep.subr.bf16.mxu0 0
        %1340 = vmatpush1.bf16.msra.mxu0 0
        %1341 = vmatprep.subr.bf16.mxu0 0
        %1342 = vmatpush1.bf16.msra.mxu0 0
        %1343 = vmatprep.subr.bf16.mxu0 0
        %1344 = vmatpush1.bf16.msra.mxu0 0
        %1345 = vmatprep.subr.bf16.mxu0 0
        %1346 = vmatpush1.bf16.msra.mxu0 0
        %1347 = vmatprep.subr.bf16.mxu0 0
        %1348 = vmatpush1.bf16.msra.mxu0 0
        %1349 = vmatprep.subr.bf16.mxu0 0
        %1350 = vmatpush1.bf16.msra.mxu0 0
        %1351 = vmatprep.subr.bf16.mxu0 0
        %1352 = vmatpush1.bf16.msra.mxu0 0
        %1353 = vmatprep.mubr.bf16.mxu0 0
        %1354 = vmatmul.mubr.bf16.gmra.mrb[0].mxu0 %v1320
        %v1355 = vpop.f32.mrb[0].mxu0
        %v1356 = vadd.f32 0.0, %v1355
        %v1357 = vpop.f32.mrb[0].mxu0
        %v1358 = vadd.f32 0.0, %v1357
        %v1359 = vpop.f32.mrb[0].mxu0
        %v1360 = vpop.f32.mrb[0].mxu0
        %1361 = vdwg.mxu0
        %1362 = vmatprep.subr.bf16.mxu0 %v842
        %1363 = vmatpush1.bf16.msra.mxu0 %v841
        %1364 = vmatprep.subr.bf16.mxu0 %v846
        %1365 = vmatpush1.bf16.msra.mxu0 %v845
        %1366 = vmatprep.subr.bf16.mxu0 %v850
        %1367 = vmatpush1.bf16.msra.mxu0 %v849
        %1368 = vmatprep.subr.bf16.mxu0 %v854
        %1369 = vmatpush1.bf16.msra.mxu0 %v853
        %1370 = vmatprep.subr.bf16.mxu0 %v858
        %1371 = vmatpush1.bf16.msra.mxu0 %v857
        %1372 = vmatprep.subr.bf16.mxu0 %v862
        %1373 = vmatpush1.bf16.msra.mxu0 %v861
        %1374 = vmatprep.subr.bf16.mxu0 %v866
        %1375 = vmatpush1.bf16.msra.mxu0 %v865
        %1376 = vmatprep.subr.bf16.mxu0 %v870
        %1377 = vmatpush1.bf16.msra.mxu0 %v869
        %1378 = vmatprep.subr.bf16.mxu0 0
        %1379 = vmatpush1.bf16.msra.mxu0 0
        %1380 = vmatprep.subr.bf16.mxu0 0
        %1381 = vmatpush1.bf16.msra.mxu0 0
        %1382 = vmatprep.subr.bf16.mxu0 0
        %1383 = vmatpush1.bf16.msra.mxu0 0
        %1384 = vmatprep.subr.bf16.mxu0 0
        %1385 = vmatpush1.bf16.msra.mxu0 0
        %1386 = vmatprep.subr.bf16.mxu0 0
        %1387 = vmatpush1.bf16.msra.mxu0 0
        %1388 = vmatprep.subr.bf16.mxu0 0
        %1389 = vmatpush1.bf16.msra.mxu0 0
        %1390 = vmatprep.subr.bf16.mxu0 0
        %1391 = vmatpush1.bf16.msra.mxu0 0
        %1392 = vmatprep.subr.bf16.mxu0 0
        %1393 = vmatpush1.bf16.msra.mxu0 0
        %1394 = vmatprep.mubr.bf16.mxu0 0
        %1395 = vmatmul.mubr.bf16.gmra.mrb[0].mxu0 %v1320
        %v1396 = vpop.f32.mrb[0].mxu0
        %v1397 = vadd.f32 0.0, %v1396
        %v1398 = vpop.f32.mrb[0].mxu0
        %v1399 = vadd.f32 0.0, %v1398
        %v1400 = vpop.f32.mrb[0].mxu0
        %v1401 = vpop.f32.mrb[0].mxu0
        %1402 = vdwg.mxu0
        %v1403 = vadd.f32 %v596, %v1356
        %v1404 = vadd.f32 %v598, %v1358
        %v1405 = vadd.f32 %v637, %v1397
        %v1406 = vadd.f32 %v639, %v1399
        %v1407 = vxor.u32 %v1403, 2147483648
        %v1408 = vmul.f32 %v1407, 1.442695
        %v1409 = vpow.pop %v1408
        %v1410 = vadd.f32 %v1409, 1.0
        %v1411 = vrcp.pop %v1410
        %v1412 = vmul.f32 1.0, %v1411
        %v1413 = vxor.u32 %v1404, 2147483648
        %v1414 = vmul.f32 %v1413, 1.442695
        %v1415 = vpow.pop %v1414
        %v1416 = vadd.f32 %v1415, 1.0
        %v1417 = vrcp.pop %v1416
        %v1418 = vmul.f32 1.0, %v1417
        %v1419 = vtanh.pop %v1405
        %v1420 = vxor.u32 %v1406, 2147483648
        %v1421 = vmul.f32 %v1420, 1.442695
        %v1422 = vpow.pop %v1421
        %v1423 = vadd.f32 %v1422, 1.0
        %v1424 = vrcp.pop %v1423
        %v1425 = vmul.f32 1.0, %v1424
        %v1426 = vmul.f32 %v1418, %v1219
        %v1427 = vmul.f32 %v1412, %v1419
        %v1428 = vadd.f32 %v1426, %v1427
        %v1429 = vtanh.pop %v1428
        %v1430 = vmul.f32 %v1425, %v1429
        %v1431 = vadd.f32 %v1430, %v310
        %1432 = vst [vmem:[%s308] sm:$0xff] %v1431
        %s1433 = sand.u32 %s149, 1
        %s1434 = scalar_lea.sflag [#allocation4], %s1433
        %s1435 = sand.u32 %s149, 1
        %s1436 = smul.addr %s1435, 8
        %s1437 = scalar_lea.vmem [#allocation10], %s1436
        // Predicated region
        $region57: #{tpu_custom_call.1} parent=39 // pred_check
          %p1438 = pneg %p159
        $region58: #{tpu_custom_call.1} parent=39 // pred_check_branch
          %1440 = sbr.rel (%p1438) target = $region60
        $region59: #{tpu_custom_call.1} parent=39 // pred_region
          %s1442 = ssub.s32 128, 128
          %1443 = vsyncadd %s1434, %s1442
          %s1444 = smul.addr %s26, 128
          %s1445 = scalar_lea.hbm %s5, %s1444
          %s1447 = sshll.u32 %s1437, 4
          %s1448 = int_to_ptr.vmem [resolvable:$true] %s1447
          %1450 = dma.vmem_to_hbm [thread:$0]  %s1448, 128, %s1445, %s1434
        $region60: #{tpu_custom_call.1} parent=39 // pred_fallthru
          _
      $region40: #{tpu_custom_call.1} parent=5 // pred_fallthru
        _
      %p1451 = scmp.le.s32.totalorder 2, %s21
      // Predicated region
      $region61: #{tpu_custom_call.1} parent=5 // pred_check
        %p1452 = pneg %p1451
      $region62: #{tpu_custom_call.1} parent=5 // pred_check_branch
        %1454 = sbr.rel (%p1452) target = $region64
      $region63: #{tpu_custom_call.1} parent=5 // pred_region
        %s1455 = ssub.s32 %s21, 2
        // Predicated region
        $region65: #{tpu_custom_call.1} parent=63 // pred_check
          %p1456 = pneg %p165
        $region66: #{tpu_custom_call.1} parent=63 // pred_check_branch
          %1458 = sbr.rel (%p1456) target = $region68
        $region67: #{tpu_custom_call.1} parent=63 // pred_region
          %s1459 = sand.u32 %s150, 1
          %s1460 = scalar_lea.sflag [#allocation4], %s1459
          %s1461 = sand.u32 %s150, 1
          %s1462 = smul.addr %s1461, 8
          %s1463 = scalar_lea.vmem [#allocation10], %s1462
          %1464 = dma.done %s1460, 128
        $region68: #{tpu_custom_call.1} parent=63 // pred_fallthru
          _
      $region64: #{tpu_custom_call.1} parent=5 // pred_fallthru
        _
    $region6: #{tpu_custom_call.1} parent=1 // loop_footer
      %s25 = sadd.s32 1, %s21
    $region7: #{tpu_custom_call.1} parent=1 // loop_footer_branch
      %20 = sbr.rel target = $region3
    $region8: #{tpu_custom_call.1} parent=1 // loop_exit
      _
    %1465 = vsyncpa [#allocation3], 1
    %s1466 = scalar_lea.sflag [#allocation3], 1
    %1467 = vsyncpa %s1466, 1
    %1468 = vsyncpa [#allocation6], 1
    %s1469 = scalar_lea.sflag [#allocation6], 1
    %1470 = vsyncpa %s1469, 1
    %1471 = vsyncpa [#allocation9], 1
    %1472 = vsyncpa [#allocation4], 1
    %s1473 = scalar_lea.sflag [#allocation4], 1
    %1474 = vsyncpa %s1473, 1

</llo_original>
